<compile_context>
chip_gen: v7x
topology: tpu7x:2x2x1
jax: 0.10.0
libtpu: 0.0.40
codegen_flags: <defaults>
</compile_context>

<pallas_src>
import math
from functools import partial

import jax
import jax.numpy as jnp
from jax.experimental import pallas as pl
from jax.experimental.pallas import tpu as pltpu

BN_EPS = 1e-5
VMEM_LIMIT = 32 * 1024 * 1024   # safe scoped-VMEM budget on v5e/v6e/v7x; tiles here use only a few MiB
PADW = 16                       # W-halo width in the scratch: keeps the interior store bf16 tile aligned


def _round_up(x, m):
    return ((x + m - 1) // m) * m


# --------------------------- 1x1 conv (pw2) as tiled matmul ---------------------------

def _matmul_affine_kernel(a_ref, w_ref, s_ref, b_ref, o_ref, *, pre_act):
    a = a_ref[...]
    if pre_act == "relu6":                     # ReLU6 of the previous stage folded in here
        a = jnp.clip(a, 0.0, 6.0)
    acc = jnp.dot(a.astype(jnp.bfloat16), w_ref[...],
                  preferred_element_type=jnp.float32)
    o_ref[...] = (acc * s_ref[...] + b_ref[...]).astype(o_ref.dtype)


def _matmul_affine_res_kernel(a_ref, w_ref, s_ref, b_ref, r_ref, o_ref, *, pre_act):
    a = a_ref[...]
    if pre_act == "relu6":
        a = jnp.clip(a, 0.0, 6.0)
    acc = jnp.dot(a.astype(jnp.bfloat16), w_ref[...],
                  preferred_element_type=jnp.float32)
    y = acc * s_ref[...] + b_ref[...]
    o_ref[...] = (y + r_ref[...].astype(jnp.float32)).astype(o_ref.dtype)


def _pick_bm(m):
    # Largest 128-multiple tile that still yields >=2 grid steps (v7x has 2 TensorCores).
    for cand in (1024, 512, 256, 128):
        if m > cand:
            return cand
    return m if m % 16 == 0 else _round_up(m, 16)


def matmul_affine(a, w, scale, bias, *, pre_act=None, residual=None, out_dtype=jnp.float32):
    """out = pre_act(a) @ w * scale + bias [+ residual]; cdiv M-tiled, bf16 MXU operands."""
    m, k = a.shape
    n = w.shape[1]
    bm = _pick_bm(m)
    in_specs = [
        pl.BlockSpec((bm, k), lambda i: (i, 0)),
        pl.BlockSpec((k, n), lambda i: (0, 0)),
        pl.BlockSpec((1, n), lambda i: (0, 0)),
        pl.BlockSpec((1, n), lambda i: (0, 0)),
    ]
    args = [a, w, scale, bias]
    if residual is not None:
        in_specs.append(pl.BlockSpec((bm, n), lambda i: (i, 0)))
        args.append(residual)
        kern = partial(_matmul_affine_res_kernel, pre_act=pre_act)
    else:
        kern = partial(_matmul_affine_kernel, pre_act=pre_act)

    # No jnp.pad of A / residual: the M tail block (if any) is masked on write, and every
    # output row depends only on its own A / residual row.
    return pl.pallas_call(
        kern,
        grid=(pl.cdiv(m, bm),),
        in_specs=in_specs,
        out_specs=pl.BlockSpec((bm, n), lambda i: (i, 0)),
        out_shape=jax.ShapeDtypeStruct((m, n), out_dtype),
        compiler_params=pltpu.CompilerParams(
            dimension_semantics=("parallel",),
            vmem_limit_bytes=VMEM_LIMIT),
    )(*args)


# ------------- fused (1x1 expand + BN + ReLU6) + depthwise 3x3 + BN kernels -------------

def _dw3x3(xp, wd_ref, h, w):
    """3x3 depthwise MAC on the VMEM-padded activation xp: (h+2, w+2*PADW, tc) bf16 -> f32."""
    acc = jnp.zeros((h, w, xp.shape[-1]), jnp.float32)
    for dr in range(3):
        xr = xp[dr:dr + h].astype(jnp.float32)               # row shift: cheap major-dim slice
        for dc in range(3):
            xc = xr[:, PADW - 1 + dc:PADW - 1 + dc + w, :]   # sublane-shifted column view
            acc = acc + xc * wd_ref[3 * dr + dc]
    return acc


def _expand_dw_bn_kernel(x_ref, w1_ref, s1_ref, b1_ref, wd_ref, sd_ref, bd_ref,
                         o_ref, pad_ref):
    # x_ref: (1, h*w, cin) bf16;  w1_ref: (cin, tc) bf16;  s1/b1/sd/bd: (1, tc) f32
    # wd_ref: (9, 1, tc) f32;  o_ref: (1, h, w, tc) bf16;  pad_ref: (h+2, w+2*PADW, tc) bf16
    _, h, w, tc = o_ref.shape
    # 1x1 expansion on the MXU, folded-BN affine + ReLU6 epilogue (stays in VMEM).
    y = jnp.dot(x_ref[0], w1_ref[...], preferred_element_type=jnp.float32)   # (h*w, tc)
    y = jnp.clip(y * s1_ref[...] + b1_ref[...], 0.0, 6.0).astype(jnp.bfloat16)
    # Zero-pad in VMEM (no HBM padding pass); interior stores land at aligned offsets.
    pad_ref[...] = jnp.zeros(pad_ref.shape, pad_ref.dtype)
    for i in range(h):
        pad_ref[i + 1, PADW:PADW + w, :] = y[i * w:(i + 1) * w, :]
    # Depthwise 3x3 with the folded-BN affine fused into the epilogue.
    o_ref[0] = (_dw3x3(pad_ref[...], wd_ref, h, w) * sd_ref[...] + bd_ref[...]
                ).astype(o_ref.dtype)


def _dw_bn_kernel(x_ref, wd_ref, sd_ref, bd_ref, o_ref, pad_ref):
    # expand_ratio == 1 path: depthwise 3x3 + folded BN only.
    _, h, w, tc = o_ref.shape
    pad_ref[...] = jnp.zeros(pad_ref.shape, pad_ref.dtype)
    pad_ref[1:h + 1, PADW:PADW + w, :] = x_ref[0]
    o_ref[0] = (_dw3x3(pad_ref[...], wd_ref, h, w) * sd_ref[...] + bd_ref[...]
                ).astype(o_ref.dtype)


def _channel_tile(c):
    # Channel-chunk size: equal to C, or a multiple of 128 that divides C (BlockSpec rule).
    for cand in (512, 384, 256, 128):
        if c > cand and c % cand == 0:
            return cand
    return c


def expand_dw_bn(x_bf, w1, s1, b1, wd, sd, bd):
    """Fused 1x1 expansion + BN + ReLU6 + depthwise 3x3 (stride 1, pad 1) + BN.  bf16 in/out."""
    b, h, w, cin = x_bf.shape
    hidden = w1.shape[1]
    tc = _channel_tile(hidden)
    x2 = x_bf.reshape(b, h * w, cin)            # free XLA reshape; keeps the in-kernel matmul 2-D
    return pl.pallas_call(
        _expand_dw_bn_kernel,
        grid=(b, hidden // tc),
        in_specs=[
            pl.BlockSpec((1, h * w, cin), lambda i, j: (i, 0, 0)),
            pl.BlockSpec((cin, tc), lambda i, j: (0, j)),
            pl.BlockSpec((1, tc), lambda i, j: (0, j)),
            pl.BlockSpec((1, tc), lambda i, j: (0, j)),
            pl.BlockSpec((9, 1, tc), lambda i, j: (0, 0, j)),
            pl.BlockSpec((1, tc), lambda i, j: (0, j)),
            pl.BlockSpec((1, tc), lambda i, j: (0, j)),
        ],
        out_specs=pl.BlockSpec((1, h, w, tc), lambda i, j: (i, 0, 0, j)),
        out_shape=jax.ShapeDtypeStruct((b, h, w, hidden), jnp.bfloat16),
        scratch_shapes=[pltpu.VMEM((h + 2, w + 2 * PADW, tc), jnp.bfloat16)],
        compiler_params=pltpu.CompilerParams(
            dimension_semantics=("parallel", "parallel"),
            vmem_limit_bytes=VMEM_LIMIT),
    )(x2, w1, s1, b1, wd, sd, bd)


def dw_bn(x_bf, wd, sd, bd):
    """Depthwise 3x3 conv (stride 1, pad 1) with the eval-BatchNorm affine fused.  bf16 in/out."""
    b, h, w, c = x_bf.shape
    tc = _channel_tile(c)
    return pl.pallas_call(
        _dw_bn_kernel,
        grid=(b, c // tc),
        in_specs=[
            pl.BlockSpec((1, h, w, tc), lambda i, j: (i, 0, 0, j)),
            pl.BlockSpec((9, 1, tc), lambda i, j: (0, 0, j)),
            pl.BlockSpec((1, tc), lambda i, j: (0, j)),
            pl.BlockSpec((1, tc), lambda i, j: (0, j)),
        ],
        out_specs=pl.BlockSpec((1, h, w, tc), lambda i, j: (i, 0, 0, j)),
        out_shape=jax.ShapeDtypeStruct((b, h, w, c), jnp.bfloat16),
        scratch_shapes=[pltpu.VMEM((h + 2, w + 2 * PADW, tc), jnp.bfloat16)],
        compiler_params=pltpu.CompilerParams(
            dimension_semantics=("parallel", "parallel"),
            vmem_limit_bytes=VMEM_LIMIT),
    )(x_bf, wd, sd, bd)


def avgpool2(x):  # 2x2 AvgPool, stride 2, floor mode, NHWC, bf16 in -> bf16 out
    # TODO(synk): fuse this into the dwconv epilogue (needs sublane-strided selects in-kernel);
    # the eval-BatchNorm affine commutes with the mean so BN already stays fused upstream.
    b, h, w, c = x.shape
    x = x[:, :(h // 2) * 2, :(w // 2) * 2, :].astype(jnp.float32)
    return x.reshape(b, h // 2, 2, w // 2, 2, c).mean(axis=(2, 4)).astype(jnp.bfloat16)


# ----------------------------- parameters -----------------------------

def _xavier(key, shape, fan_in, fan_out):
    bound = math.sqrt(6.0 / (fan_in + fan_out))
    return jax.random.uniform(key, shape, jnp.float32, -bound, bound)


def _folded_bn(c, gamma=1.0, beta=0.0, mean=0.0, var=1.0, pad_to=None):
    # eval-mode BatchNorm folded to a per-channel scale/bias (init_bn: weight=1, bias=0).
    cp = pad_to or c
    scale = gamma / math.sqrt(var + BN_EPS)
    s = jnp.full((1, cp), scale, jnp.float32)
    b = jnp.full((1, cp), beta - mean * scale, jnp.float32)
    if cp != c:
        # padded channels must have zero bias so the zero padding stays exact end-to-end
        b = b.at[:, c:].set(0.0)
    return s, b


def make_inverted_residual_params(key, inp, oup, stride, expand_ratio):
    assert stride in (1, 2)
    hidden = round(inp * expand_ratio)
    # Pad hidden to a multiple of 128 (lane-dense stores / dense MXU tiles) when the overhead is
    # <= 33%; padded channels carry exact zeros (zero weights / zero biases) so semantics match.
    hp = _round_up(hidden, 128)
    hidden_p = hp if (expand_ratio != 1 and 3 * hp <= 4 * hidden) else hidden

    p = {"inp": inp, "oup": oup, "stride": stride, "expand_ratio": expand_ratio,
         "hidden": hidden_p, "use_res": (stride == 1 and inp == oup)}
    k1, k2, k3 = jax.random.split(key, 3)
    if expand_ratio != 1:
        w1 = _xavier(k1, (hidden, inp), inp, hidden).T               # Conv2d(inp, hidden, 1), xavier
        p["pw1_w"] = jnp.pad(w1, ((0, 0), (0, hidden_p - hidden))).astype(jnp.bfloat16)
        p["pw1_scale"], p["pw1_bias"] = _folded_bn(hidden, pad_to=hidden_p)
    wd = _xavier(k2, (hidden, 1, 3, 3), 9, hidden * 9)               # depthwise Conv2d(.., 3, groups=hidden)
    wd9 = wd.reshape(hidden, 9).T.reshape(9, 1, hidden)              # (9, 1, hidden), f32 (VPU MAC)
    p["dw_w"] = jnp.pad(wd9, ((0, 0), (0, 0), (0, hidden_p - hidden)))
    p["dw_scale"], p["dw_bias"] = _folded_bn(hidden, pad_to=hidden_p)
    w2 = _xavier(k3, (oup, hidden), hidden, oup).T                   # Conv2d(hidden, oup, 1), xavier
    p["pw2_w"] = jnp.pad(w2, ((0, hidden_p - hidden), (0, 0))).astype(jnp.bfloat16)
    p["pw2_scale"], p["pw2_bias"] = _folded_bn(oup)
    return p


# ----------------------------- module forward -----------------------------

def inverted_residual_forward(params, x, *, channels_last=False):
    """Pallas forward of InvertedResidual.  NCHW like PyTorch unless channels_last=True (NHWC)."""
    if not channels_last:
        x = jnp.transpose(x, (0, 2, 3, 1))                           # NHWC
    x = x.astype(jnp.float32)
    x_bf = x.astype(jnp.bfloat16)

    if params["expand_ratio"] != 1:
        y = expand_dw_bn(x_bf, params["pw1_w"], params["pw1_scale"], params["pw1_bias"],
                         params["dw_w"], params["dw_scale"], params["dw_bias"])
    else:
        y = dw_bn(x_bf, params["dw_w"], params["dw_scale"], params["dw_bias"])

    if params["stride"] == 2:
        y = avgpool2(y)                                              # AvgPool2d(2) (commutes with BN)

    b2, h2, w2_, hp = y.shape
    oup = params["pw2_w"].shape[1]
    res = x_bf.reshape(-1, oup) if params["use_res"] else None
    out = matmul_affine(y.reshape(-1, hp), params["pw2_w"],
                        params["pw2_scale"], params["pw2_bias"],
                        pre_act="relu6", residual=res, out_dtype=jnp.float32)
    out = out.reshape(b2, h2, w2_, oup)
    if not channels_last:
        out = jnp.transpose(out, (0, 3, 1, 2))                       # back to NCHW
    return out


# ------------------- plain-JAX reference (same bf16 rounding points) -------------------

def reference_forward(params, x, *, channels_last=False):
    f32 = jnp.float32
    bf = lambda v: v.astype(jnp.bfloat16).astype(f32)
    if not channels_last:
        x = jnp.transpose(x, (0, 2, 3, 1))
    x = x.astype(f32)
    xb = bf(x)
    b, h, w, cin = x.shape
    if params["expand_ratio"] != 1:
        y = jnp.einsum("bhwk,kn->bhwn", xb, params["pw1_w"].astype(f32),
                       precision=jax.lax.Precision.HIGHEST)
        y = bf(jnp.clip(y * params["pw1_scale"] + params["pw1_bias"], 0.0, 6.0))
    else:
        y = xb
    xp = jnp.pad(y, ((0, 0), (1, 1), (1, 1), (0, 0)))
    acc = jnp.zeros_like(y)
    for dr in range(3):
        for dc in range(3):
            acc = acc + xp[:, dr:dr + h, dc:dc + w, :] * params["dw_w"][3 * dr + dc]
    y = bf(acc * params["dw_scale"] + params["dw_bias"])
    if params["stride"] == 2:
        bb, hh, ww, cc = y.shape
        y = bf(y[:, :(hh // 2) * 2, :(ww // 2) * 2, :].reshape(
            bb, hh // 2, 2, ww // 2, 2, cc).mean(axis=(2, 4)))
    y = jnp.clip(y, 0.0, 6.0)
    out = jnp.einsum("bhwk,kn->bhwn", y, params["pw2_w"].astype(f32),
                     precision=jax.lax.Precision.HIGHEST)
    out = out * params["pw2_scale"] + params["pw2_bias"]
    if params["use_res"]:
        out = out + xb
    if not channels_last:
        out = jnp.transpose(out, (0, 3, 1, 2))
    return out


# ----------------------------- main -----------------------------

if __name__ == "__main__":
    key = jax.random.PRNGKey(0)
    kx, k1, k2, k3 = jax.random.split(key, 4)

    B, H, W = 2, 16, 16
    x = 0.5 * jax.random.normal(kx, (B, 16, H, W), jnp.float32)      # NCHW, like PyTorch

    # Three configs exercising every code path of the module:
    #   expand_ratio==1 + residual; expand_ratio!=1 + stride-2 AvgPool; expand_ratio!=1 + residual.
    blocks = [
        make_inverted_residual_params(k1, inp=16, oup=16, stride=1, expand_ratio=1),
        make_inverted_residual_params(k2, inp=16, oup=24, stride=2, expand_ratio=6),
        make_inverted_residual_params(k3, inp=24, oup=24, stride=1, expand_ratio=6),
    ]

    # Kernel path: stay NHWC between chained blocks, NCHW only at the network boundary.
    out = jnp.transpose(x, (0, 2, 3, 1))
    for p in blocks:
        out = inverted_residual_forward(p, out, channels_last=True)
    out = jnp.transpose(out, (0, 3, 1, 2))

    ref = x
    for p in blocks:
        ref = reference_forward(p, ref)

    out = jax.block_until_ready(out)
    ref = jax.block_until_ready(ref)

    assert out.shape == (B, 24, H // 2, W // 2), out.shape
    assert bool(jnp.all(jnp.isfinite(out)))
    err = float(jnp.max(jnp.abs(out - ref)))
    assert err < 5e-2, f"max abs error vs reference: {err}"
    print("KERNEL_OK")
</pallas_src>

<mosaic_0001>
module attributes {stable_mosaic.version = 11 : i64} {
  func.func @_dw_bn_kernel(%arg0: i32, %arg1: i32, %arg2: memref<1x16x16x16xbf16, #tpu.memory_space<vmem>>, %arg3: memref<9x1x16xf32, #tpu.memory_space<vmem>>, %arg4: memref<1x16xf32, #tpu.memory_space<vmem>>, %arg5: memref<1x16xf32, #tpu.memory_space<vmem>>, %arg6: memref<1x16x16x16xbf16, #tpu.memory_space<vmem>>, %arg7: memref<18x48x16xbf16, #tpu.memory_space<vmem>>) attributes {dimension_semantics = [#tpu.dimension_semantics<parallel>, #tpu.dimension_semantics<parallel>], iteration_bounds = array<i64: 2, 1>, scalar_prefetch = 0 : i64, scratch_operands = 1 : i64, tpu.core_type = #tpu.core_type<tc>, window_params = [{transform_indices = @transform_0, window_bounds = array<i64: 1, 16, 16, 16>}, {transform_indices = @transform_1, window_bounds = array<i64: 9, 1, 16>}, {transform_indices = @transform_2, window_bounds = array<i64: 1, 16>}, {transform_indices = @transform_3, window_bounds = array<i64: 1, 16>}, {transform_indices = @transform_4, window_bounds = array<i64: 1, 16, 16, 16>}]} {
    %cst = arith.constant 0.000000e+00 : bf16
    %0 = vector.broadcast %cst : bf16 to vector<18x48x16xbf16>
    %c0 = arith.constant 0 : index
    %c0_0 = arith.constant 0 : index
    %c0_1 = arith.constant 0 : index
    %1 = vector.load %arg7[%c0, %c0_0, %c0_1] : memref<18x48x16xbf16, #tpu.memory_space<vmem>>, vector<18x48x16xbf16>
    tpu.vector_store %arg7[%c0, %c0_0, %c0_1], %0 {strides = array<i32>} : memref<18x48x16xbf16, #tpu.memory_space<vmem>>, vector<18x48x16xbf16>,
    %c0_2 = arith.constant 0 : index
    %c0_3 = arith.constant 0 : index
    %c0_4 = arith.constant 0 : index
    %c0_5 = arith.constant 0 : index
    %2 = vector.load %arg2[%c0_2, %c0_3, %c0_4, %c0_5] : memref<1x16x16x16xbf16, #tpu.memory_space<vmem>>, vector<1x16x16x16xbf16>
    %3 = vector.shape_cast %2 : vector<1x16x16x16xbf16> to vector<16x16x16xbf16>
    %c1 = arith.constant 1 : index
    %c16 = arith.constant 16 : index
    %c0_6 = arith.constant 0 : index
    %4 = vector.load %arg7[%c1, %c16, %c0_6] : memref<18x48x16xbf16, #tpu.memory_space<vmem>>, vector<16x16x16xbf16>
    tpu.vector_store %arg7[%c1, %c16, %c0_6], %3 {strides = array<i32>} : memref<18x48x16xbf16, #tpu.memory_space<vmem>>, vector<16x16x16xbf16>,
    %c0_7 = arith.constant 0 : index
    %c0_8 = arith.constant 0 : index
    %c0_9 = arith.constant 0 : index
    %5 = vector.load %arg7[%c0_7, %c0_8, %c0_9] : memref<18x48x16xbf16, #tpu.memory_space<vmem>>, vector<18x48x16xbf16>
    %cst_10 = arith.constant 0.000000e+00 : f32
    %6 = vector.broadcast %cst_10 : f32 to vector<16x16x16xf32>
    %7 = vector.extract_strided_slice %5 {offsets = [0, 0, 0], sizes = [16, 48, 16], strides = [1, 1, 1]} : vector<18x48x16xbf16> to vector<16x48x16xbf16>
    %8 = arith.extf %7 : vector<16x48x16xbf16> to vector<16x48x16xf32>
    %9 = vector.extract_strided_slice %8 {offsets = [0, 15, 0], sizes = [16, 16, 16], strides = [1, 1, 1]} : vector<16x48x16xf32> to vector<16x16x16xf32>
    %c0_11 = arith.constant 0 : index
    %c0_12 = arith.constant 0 : index
    %c0_13 = arith.constant 0 : index
    %10 = vector.load %arg3[%c0_11, %c0_12, %c0_13] : memref<9x1x16xf32, #tpu.memory_space<vmem>>, vector<1x1x16xf32>
    %11 = vector.shape_cast %10 : vector<1x1x16xf32> to vector<1x16xf32>
    %12 = vector.shape_cast %11 : vector<1x16xf32> to vector<1x1x16xf32>
    %13 = vector.broadcast %12 : vector<1x1x16xf32> to vector<16x16x16xf32>
    %14 = arith.mulf %9, %13 : vector<16x16x16xf32>
    %15 = arith.addf %6, %14 : vector<16x16x16xf32>
    %16 = vector.extract_strided_slice %8 {offsets = [0, 16, 0], sizes = [16, 16, 16], strides = [1, 1, 1]} : vector<16x48x16xf32> to vector<16x16x16xf32>
    %c1_14 = arith.constant 1 : index
    %c0_15 = arith.constant 0 : index
    %c0_16 = arith.constant 0 : index
    %17 = vector.load %arg3[%c1_14, %c0_15, %c0_16] : memref<9x1x16xf32, #tpu.memory_space<vmem>>, vector<1x1x16xf32>
    %18 = vector.shape_cast %17 : vector<1x1x16xf32> to vector<1x16xf32>
    %19 = vector.shape_cast %18 : vector<1x16xf32> to vector<1x1x16xf32>
    %20 = vector.broadcast %19 : vector<1x1x16xf32> to vector<16x16x16xf32>
    %21 = arith.mulf %16, %20 : vector<16x16x16xf32>
    %22 = arith.addf %15, %21 : vector<16x16x16xf32>
    %23 = vector.extract_strided_slice %8 {offsets = [0, 17, 0], sizes = [16, 16, 16], strides = [1, 1, 1]} : vector<16x48x16xf32> to vector<16x16x16xf32>
    %c2 = arith.constant 2 : index
    %c0_17 = arith.constant 0 : index
    %c0_18 = arith.constant 0 : index
    %24 = vector.load %arg3[%c2, %c0_17, %c0_18] : memref<9x1x16xf32, #tpu.memory_space<vmem>>, vector<1x1x16xf32>
    %25 = vector.shape_cast %24 : vector<1x1x16xf32> to vector<1x16xf32>
    %26 = vector.shape_cast %25 : vector<1x16xf32> to vector<1x1x16xf32>
    %27 = vector.broadcast %26 : vector<1x1x16xf32> to vector<16x16x16xf32>
    %28 = arith.mulf %23, %27 : vector<16x16x16xf32>
    %29 = arith.addf %22, %28 : vector<16x16x16xf32>
    %30 = vector.extract_strided_slice %5 {offsets = [1, 0, 0], sizes = [16, 48, 16], strides = [1, 1, 1]} : vector<18x48x16xbf16> to vector<16x48x16xbf16>
    %31 = arith.extf %30 : vector<16x48x16xbf16> to vector<16x48x16xf32>
    %32 = vector.extract_strided_slice %31 {offsets = [0, 15, 0], sizes = [16, 16, 16], strides = [1, 1, 1]} : vector<16x48x16xf32> to vector<16x16x16xf32>
    %c3 = arith.constant 3 : index
    %c0_19 = arith.constant 0 : index
    %c0_20 = arith.constant 0 : index
    %33 = vector.load %arg3[%c3, %c0_19, %c0_20] : memref<9x1x16xf32, #tpu.memory_space<vmem>>, vector<1x1x16xf32>
    %34 = vector.shape_cast %33 : vector<1x1x16xf32> to vector<1x16xf32>
    %35 = vector.shape_cast %34 : vector<1x16xf32> to vector<1x1x16xf32>
    %36 = vector.broadcast %35 : vector<1x1x16xf32> to vector<16x16x16xf32>
    %37 = arith.mulf %32, %36 : vector<16x16x16xf32>
    %38 = arith.addf %29, %37 : vector<16x16x16xf32>
    %39 = vector.extract_strided_slice %31 {offsets = [0, 16, 0], sizes = [16, 16, 16], strides = [1, 1, 1]} : vector<16x48x16xf32> to vector<16x16x16xf32>
    %c4 = arith.constant 4 : index
    %c0_21 = arith.constant 0 : index
    %c0_22 = arith.constant 0 : index
    %40 = vector.load %arg3[%c4, %c0_21, %c0_22] : memref<9x1x16xf32, #tpu.memory_space<vmem>>, vector<1x1x16xf32>
    %41 = vector.shape_cast %40 : vector<1x1x16xf32> to vector<1x16xf32>
    %42 = vector.shape_cast %41 : vector<1x16xf32> to vector<1x1x16xf32>
    %43 = vector.broadcast %42 : vector<1x1x16xf32> to vector<16x16x16xf32>
    %44 = arith.mulf %39, %43 : vector<16x16x16xf32>
    %45 = arith.addf %38, %44 : vector<16x16x16xf32>
    %46 = vector.extract_strided_slice %31 {offsets = [0, 17, 0], sizes = [16, 16, 16], strides = [1, 1, 1]} : vector<16x48x16xf32> to vector<16x16x16xf32>
    %c5 = arith.constant 5 : index
    %c0_23 = arith.constant 0 : index
    %c0_24 = arith.constant 0 : index
    %47 = vector.load %arg3[%c5, %c0_23, %c0_24] : memref<9x1x16xf32, #tpu.memory_space<vmem>>, vector<1x1x16xf32>
    %48 = vector.shape_cast %47 : vector<1x1x16xf32> to vector<1x16xf32>
    %49 = vector.shape_cast %48 : vector<1x16xf32> to vector<1x1x16xf32>
    %50 = vector.broadcast %49 : vector<1x1x16xf32> to vector<16x16x16xf32>
    %51 = arith.mulf %46, %50 : vector<16x16x16xf32>
    %52 = arith.addf %45, %51 : vector<16x16x16xf32>
    %53 = vector.extract_strided_slice %5 {offsets = [2, 0, 0], sizes = [16, 48, 16], strides = [1, 1, 1]} : vector<18x48x16xbf16> to vector<16x48x16xbf16>
    %54 = arith.extf %53 : vector<16x48x16xbf16> to vector<16x48x16xf32>
    %55 = vector.extract_strided_slice %54 {offsets = [0, 15, 0], sizes = [16, 16, 16], strides = [1, 1, 1]} : vector<16x48x16xf32> to vector<16x16x16xf32>
    %c6 = arith.constant 6 : index
    %c0_25 = arith.constant 0 : index
    %c0_26 = arith.constant 0 : index
    %56 = vector.load %arg3[%c6, %c0_25, %c0_26] : memref<9x1x16xf32, #tpu.memory_space<vmem>>, vector<1x1x16xf32>
    %57 = vector.shape_cast %56 : vector<1x1x16xf32> to vector<1x16xf32>
    %58 = vector.shape_cast %57 : vector<1x16xf32> to vector<1x1x16xf32>
    %59 = vector.broadcast %58 : vector<1x1x16xf32> to vector<16x16x16xf32>
    %60 = arith.mulf %55, %59 : vector<16x16x16xf32>
    %61 = arith.addf %52, %60 : vector<16x16x16xf32>
    %62 = vector.extract_strided_slice %54 {offsets = [0, 16, 0], sizes = [16, 16, 16], strides = [1, 1, 1]} : vector<16x48x16xf32> to vector<16x16x16xf32>
    %c7 = arith.constant 7 : index
    %c0_27 = arith.constant 0 : index
    %c0_28 = arith.constant 0 : index
    %63 = vector.load %arg3[%c7, %c0_27, %c0_28] : memref<9x1x16xf32, #tpu.memory_space<vmem>>, vector<1x1x16xf32>
    %64 = vector.shape_cast %63 : vector<1x1x16xf32> to vector<1x16xf32>
    %65 = vector.shape_cast %64 : vector<1x16xf32> to vector<1x1x16xf32>
    %66 = vector.broadcast %65 : vector<1x1x16xf32> to vector<16x16x16xf32>
    %67 = arith.mulf %62, %66 : vector<16x16x16xf32>
    %68 = arith.addf %61, %67 : vector<16x16x16xf32>
    %69 = vector.extract_strided_slice %54 {offsets = [0, 17, 0], sizes = [16, 16, 16], strides = [1, 1, 1]} : vector<16x48x16xf32> to vector<16x16x16xf32>
    %c8 = arith.constant 8 : index
    %c0_29 = arith.constant 0 : index
    %c0_30 = arith.constant 0 : index
    %70 = vector.load %arg3[%c8, %c0_29, %c0_30] : memref<9x1x16xf32, #tpu.memory_space<vmem>>, vector<1x1x16xf32>
    %71 = vector.shape_cast %70 : vector<1x1x16xf32> to vector<1x16xf32>
    %72 = vector.shape_cast %71 : vector<1x16xf32> to vector<1x1x16xf32>
    %73 = vector.broadcast %72 : vector<1x1x16xf32> to vector<16x16x16xf32>
    %74 = arith.mulf %69, %73 : vector<16x16x16xf32>
    %75 = arith.addf %68, %74 : vector<16x16x16xf32>
    %c0_31 = arith.constant 0 : index
    %c0_32 = arith.constant 0 : index
    %76 = vector.load %arg4[%c0_31, %c0_32] : memref<1x16xf32, #tpu.memory_space<vmem>>, vector<1x16xf32>
    %77 = vector.shape_cast %76 : vector<1x16xf32> to vector<1x1x16xf32>
    %78 = vector.broadcast %77 : vector<1x1x16xf32> to vector<16x16x16xf32>
    %79 = arith.mulf %75, %78 : vector<16x16x16xf32>
    %c0_33 = arith.constant 0 : index
    %c0_34 = arith.constant 0 : index
    %80 = vector.load %arg5[%c0_33, %c0_34] : memref<1x16xf32, #tpu.memory_space<vmem>>, vector<1x16xf32>
    %81 = vector.shape_cast %80 : vector<1x16xf32> to vector<1x1x16xf32>
    %82 = vector.broadcast %81 : vector<1x1x16xf32> to vector<16x16x16xf32>
    %83 = arith.addf %79, %82 : vector<16x16x16xf32>
    %84 = arith.truncf %83 : vector<16x16x16xf32> to vector<16x16x16xbf16>
    %c0_35 = arith.constant 0 : index
    %c0_36 = arith.constant 0 : index
    %c0_37 = arith.constant 0 : index
    %c0_38 = arith.constant 0 : index
    %85 = vector.load %arg6[%c0_35, %c0_36, %c0_37, %c0_38] : memref<1x16x16x16xbf16, #tpu.memory_space<vmem>>, vector<1x16x16x16xbf16>
    %86 = vector.shape_cast %85 : vector<1x16x16x16xbf16> to vector<16x16x16xbf16>
    %87 = vector.shape_cast %84 : vector<16x16x16xbf16> to vector<1x16x16x16xbf16>
    tpu.vector_store %arg6[%c0_35, %c0_36, %c0_37, %c0_38], %87 {strides = array<i32>} : memref<1x16x16x16xbf16, #tpu.memory_space<vmem>>, vector<1x16x16x16xbf16>,
    return
  }
  func.func @transform_0(%arg0: i32, %arg1: i32) -> (i32, i32, i32, i32) {
    %c0_i32 = arith.constant 0 : i32
    %c0_i32_0 = arith.constant 0 : i32
    %c0_i32_1 = arith.constant 0 : i32
    return %arg0, %c0_i32, %c0_i32_0, %arg1 : i32, i32, i32, i32
  }
  func.func @transform_1(%arg0: i32, %arg1: i32) -> (i32, i32, i32) {
    %c0_i32 = arith.constant 0 : i32
    %c0_i32_0 = arith.constant 0 : i32
    %c0_i32_1 = arith.constant 0 : i32
    return %c0_i32, %c0_i32_0, %arg1 : i32, i32, i32
  }
  func.func @transform_2(%arg0: i32, %arg1: i32) -> (i32, i32) {
    %c0_i32 = arith.constant 0 : i32
    %c0_i32_0 = arith.constant 0 : i32
    return %c0_i32, %arg1 : i32, i32
  }
  func.func @transform_3(%arg0: i32, %arg1: i32) -> (i32, i32) {
    %c0_i32 = arith.constant 0 : i32
    %c0_i32_0 = arith.constant 0 : i32
    return %c0_i32, %arg1 : i32, i32
  }
  func.func @transform_4(%arg0: i32, %arg1: i32) -> (i32, i32, i32, i32) {
    %c0_i32 = arith.constant 0 : i32
    %c0_i32_0 = arith.constant 0 : i32
    %c0_i32_1 = arith.constant 0 : i32
    return %arg0, %c0_i32, %c0_i32_0, %arg1 : i32, i32, i32, i32
  }
}

</mosaic_0001>

<llo_original>
// kernel: tpu_custom_call.1
$region0: #{tpu_custom_call.1}
  #allocation0 [shape = 'u32[]', space=smem, size = 0x4, offset = 0x4, fixed_abs, tag = 'smem constant byte address 0x4 - core index']
  #allocation1 [shape = 'u32[144,128]{1,0:T(1,128)}', space=vmem, size = 0x12000, scoped, tag = 'internal scratch']
  #allocation2 [shape = 'bf16[18,48,16]{2,1,0:T(16,128)(2,1)}', space=vmem, size = 0x36000, scoped, tag = 'scratch operand']
  %s0 = inlined_call_operand.hbm [shape: bf16[2,16,16,16], index: 0, kind: input, shape index: {}]
  %s1 = inlined_call_operand.hbm [shape: f32[9,1,16], index: 1, kind: input, shape index: {}]
  %s2 = inlined_call_operand.vmem [shape: f32[1,16], index: 2, kind: input, shape index: {}]
  %s3 = inlined_call_operand.vmem [shape: f32[1,16], index: 3, kind: input, shape index: {}]
  %s4 = inlined_call_operand.hbm [shape: bf16[2,16,16,16], index: 4, kind: output, shape index: {}]
  %s5 = sld [smem:[#allocation0]]
  $region57: #{tpu_custom_call.1} parent=0
    _
  %s7 = ssub.s32 1, %s5
  %s8 = scalar_select 0, %s7, %s5
  $region1: #{tpu_custom_call.1} parent=0
    #allocation3 [shape = 'u8[131072]{0}', space=vmem, size = 0x20000, scoped, tag = 'input window, operand 0']
    #allocation4 [shape = 's32[2]{0}', space=sflag, size = 0x8, scoped, tag = 'scoped memory for tpu_custom_call.1']
    #allocation5 [shape = 's32[2]{0}', space=sflag, size = 0x8, scoped, tag = 'scoped memory for tpu_custom_call.1']
    #allocation6 [shape = 'u8[4608]{0}', space=vmem, size = 0x1400, scoped, tag = 'input window, operand 1, single buffered']
    #allocation7 [shape = 's32[1]{0}', space=sflag, size = 0x4, scoped, tag = 'scoped memory for tpu_custom_call.1']
    #allocation8 [shape = 'u8[131072]{0}', space=vmem, size = 0x20000, scoped, tag = 'output window, operand 0']
    %9 = vsyncpa [#allocation4], 0
    %s10 = scalar_lea.sflag [#allocation4], 1
    %11 = vsyncpa %s10, 0
    %12 = vsyncpa [#allocation7], 0
    %13 = vsyncpa [#allocation5], 0
    %s14 = scalar_lea.sflag [#allocation5], 1
    %15 = vsyncpa %s14, 0
    loop: start=0, step=1, limit=4
    $region2: #{tpu_custom_call.1} parent=1 // loop_pre_header
      _
    $region3: #{tpu_custom_call.1} parent=1 // loop_header
      %s17 = sphi 0, %s21
      %p18 = scmp.ge.s32.totalorder %s17, 4
      %s24 = sphi 0, %s36
      %s25 = sphi 0, %s32
      %s26 = sphi 0, %s24
      %s27 = sphi 0, %s25
      %s28 = sphi 0, %s26
      %s29 = sphi 0, %s27
      %s41 = sphi 0, %s43
      %s44 = sphi 0, %s41
      %s45 = sphi 0, %s44
      %s61 = sphi 0, %s45
      %s67 = sphi 0, %s69
      %s70 = sphi 0, %s67
      %s71 = sphi 0, %s70
      %s87 = sphi 0, %s71
      %s93 = sphi 0, %s95
      %s96 = sphi 0, %s93
      %s97 = sphi 0, %s96
      %s113 = sphi 0, %s97
      %s119 = sphi 0, %s121
      %s122 = sphi 0, %s119
      %s123 = sphi 0, %s122
      %s139 = sphi 0, %s123
      %s147 = sphi 0, %s149
      %s150 = sphi 0, %s147
      %s151 = sphi 0, %s150
      %s167 = sphi 0, %s151
    $region4: #{tpu_custom_call.1} parent=1 // loop_header_branch
      %20 = sbr.rel (%p18) target = $region8
    $region5: #{tpu_custom_call.1} parent=1 // loop_body
      %s22 = ssub.s32 %s17, 1
      %s23 = ssub.s32 %s17, 2
      %s30 = sadd.s32 1, %s25
      %p31 = scmp.ge.s32.totalorder %s30, 1
      %s32 = scalar_select %p31, 0, %s30
      %s33 = sadd.s32 1, %s24
      %s34 = scalar_select %p31, %s33, %s24
      %p35 = scmp.ge.s32.totalorder %s34, 2
      %s36 = scalar_select %p35, 0, %s34
      %s37 = ssub.s32 %s24, %s36
      %s38 = ssub.s32 %s25, %s32
      %s39 = sor.u32 %s37, %s38
      %p40 = scmp.eq.s32.totalorder %s39, 0
      %s42 = sadd.s32 %s41, 1
      %s43 = scalar_select %p40, %s41, %s42
      %p46 = pneg %p40
      %p47 = scmp.eq.s32.totalorder %s17, 1
      %p48 = por %p46, %p47
      %p49 = scmp.ne.s32.totalorder %s41, %s44
      %p50 = scmp.eq.s32.totalorder %s17, 0
      %p51 = por %p49, %p50
      %p52 = scmp.ne.s32.totalorder %s41, %s44
      %p53 = scmp.eq.s32.totalorder %s22, 1
      %p54 = por %p52, %p53
      %p55 = scmp.ne.s32.totalorder %s44, %s45
      %p56 = scmp.eq.s32.totalorder %s22, 0
      %p57 = por %p55, %p56
      %p58 = scmp.ne.s32.totalorder %s44, %s45
      %p59 = scmp.eq.s32.totalorder %s23, 1
      %p60 = por %p58, %p59
      %p62 = scmp.ne.s32.totalorder %s45, %s61
      %p63 = scmp.eq.s32.totalorder %s23, 0
      %p64 = por %p62, %p63
      %s65 = ssub.s32 %s25, %s32
      %p66 = scmp.eq.s32.totalorder %s65, 0
      %s68 = sadd.s32 %s67, 1
      %s69 = scalar_select %p66, %s67, %s68
      %p72 = pneg %p66
      %p73 = scmp.eq.s32.totalorder %s17, 1
      %p74 = por %p72, %p73
      %p75 = scmp.ne.s32.totalorder %s67, %s70
      %p76 = scmp.eq.s32.totalorder %s17, 0
      %p77 = por %p75, %p76
      %p78 = scmp.ne.s32.totalorder %s67, %s70
      %p79 = scmp.eq.s32.totalorder %s22, 1
      %p80 = por %p78, %p79
      %p81 = scmp.ne.s32.totalorder %s70, %s71
      %p82 = scmp.eq.s32.totalorder %s22, 0
      %p83 = por %p81, %p82
      %p84 = scmp.ne.s32.totalorder %s70, %s71
      %p85 = scmp.eq.s32.totalorder %s23, 1
      %p86 = por %p84, %p85
      %p88 = scmp.ne.s32.totalorder %s71, %s87
      %p89 = scmp.eq.s32.totalorder %s23, 0
      %p90 = por %p88, %p89
      %s91 = ssub.s32 %s25, %s32
      %p92 = scmp.eq.s32.totalorder %s91, 0
      %s94 = sadd.s32 %s93, 1
      %s95 = scalar_select %p92, %s93, %s94
      %p98 = pneg %p92
      %p99 = scmp.eq.s32.totalorder %s17, 1
      %p100 = por %p98, %p99
      %p101 = scmp.ne.s32.totalorder %s93, %s96
      %p102 = scmp.eq.s32.totalorder %s17, 0
      %p103 = por %p101, %p102
      %p104 = scmp.ne.s32.totalorder %s93, %s96
      %p105 = scmp.eq.s32.totalorder %s22, 1
      %p106 = por %p104, %p105
      %p107 = scmp.ne.s32.totalorder %s96, %s97
      %p108 = scmp.eq.s32.totalorder %s22, 0
      %p109 = por %p107, %p108
      %p110 = scmp.ne.s32.totalorder %s96, %s97
      %p111 = scmp.eq.s32.totalorder %s23, 1
      %p112 = por %p110, %p111
      %p114 = scmp.ne.s32.totalorder %s97, %s113
      %p115 = scmp.eq.s32.totalorder %s23, 0
      %p116 = por %p114, %p115
      %s117 = ssub.s32 %s25, %s32
      %p118 = scmp.eq.s32.totalorder %s117, 0
      %s120 = sadd.s32 %s119, 1
      %s121 = scalar_select %p118, %s119, %s120
      %p124 = pneg %p118
      %p125 = scmp.eq.s32.totalorder %s17, 1
      %p126 = por %p124, %p125
      %p127 = scmp.ne.s32.totalorder %s119, %s122
      %p128 = scmp.eq.s32.totalorder %s17, 0
      %p129 = por %p127, %p128
      %p130 = scmp.ne.s32.totalorder %s119, %s122
      %p131 = scmp.eq.s32.totalorder %s22, 1
      %p132 = por %p130, %p131
      %p133 = scmp.ne.s32.totalorder %s122, %s123
      %p134 = scmp.eq.s32.totalorder %s22, 0
      %p135 = por %p133, %p134
      %p136 = scmp.ne.s32.totalorder %s122, %s123
      %p137 = scmp.eq.s32.totalorder %s23, 1
      %p138 = por %p136, %p137
      %p140 = scmp.ne.s32.totalorder %s123, %s139
      %p141 = scmp.eq.s32.totalorder %s23, 0
      %p142 = por %p140, %p141
      %s143 = ssub.s32 %s24, %s36
      %s144 = ssub.s32 %s25, %s32
      %s145 = sor.u32 %s143, %s144
      %p146 = scmp.eq.s32.totalorder %s145, 0
      %s148 = sadd.s32 %s147, 1
      %s149 = scalar_select %p146, %s147, %s148
      %p152 = pneg %p146
      %p153 = scmp.eq.s32.totalorder %s17, 1
      %p154 = por %p152, %p153
      %p155 = scmp.ne.s32.totalorder %s147, %s150
      %p156 = scmp.eq.s32.totalorder %s17, 0
      %p157 = por %p155, %p156
      %p158 = scmp.ne.s32.totalorder %s147, %s150
      %p159 = scmp.eq.s32.totalorder %s22, 1
      %p160 = por %p158, %p159
      %p161 = scmp.ne.s32.totalorder %s150, %s151
      %p162 = scmp.eq.s32.totalorder %s22, 0
      %p163 = por %p161, %p162
      %p164 = scmp.ne.s32.totalorder %s150, %s151
      %p165 = scmp.eq.s32.totalorder %s23, 1
      %p166 = por %p164, %p165
      %p168 = scmp.ne.s32.totalorder %s151, %s167
      %p169 = scmp.eq.s32.totalorder %s23, 0
      %p170 = por %p168, %p169
      %p171 = scmp.le.s32.totalorder 1, %s17
      %p172 = scmp.lt.s32.totalorder %s17, 3
      %p173 = pnand %p171, %p172
      %p174 = pneg %p173
      // Predicated region
      $region9: #{tpu_custom_call.1} parent=5 // pred_check
        _
      $region10: #{tpu_custom_call.1} parent=5 // pred_check_branch
        %176 = sbr.rel (%p173) target = $region12
      $region11: #{tpu_custom_call.1} parent=5 // pred_region
        %s177 = ssub.s32 %s17, 1
        // Predicated region
        $region13: #{tpu_custom_call.1} parent=11 // pred_check
          %p178 = pneg %p83
        $region14: #{tpu_custom_call.1} parent=11 // pred_check_branch
          %180 = sbr.rel (%p178) target = $region16
        $region15: #{tpu_custom_call.1} parent=11 // pred_region
          %s182 = ssub.s32 144, 144
          %183 = vsyncadd [#allocation7], %s182
          %s184 = smul.addr %s27, 16
          %s185 = scalar_lea.hbm %s1, %s184
          %s186 = sshll.u32 [#allocation6], 4
          %s187 = int_to_ptr.vmem [resolvable:$true] %s186
          %192 = dma.hbm_to_vmem [thread:$0]  %s185, 144, %s187, [#allocation7], 16, 16, 1
        $region16: #{tpu_custom_call.1} parent=11 // pred_fallthru
          _
        // Predicated region
        $region17: #{tpu_custom_call.1} parent=11 // pred_check
          %p193 = pneg %p109
        $region18: #{tpu_custom_call.1} parent=11 // pred_check_branch
          %195 = sbr.rel (%p193) target = $region20
        $region19: #{tpu_custom_call.1} parent=11 // pred_region
          %p196 = scmp.lt.s32.totalorder %s27, 0
          %s197 = scalar_select %p196, %s27, 0
          %s198 = scalar_lea.vmem %s2, %s197
        $region20: #{tpu_custom_call.1} parent=11 // pred_fallthru
          _
        // Predicated region
        $region21: #{tpu_custom_call.1} parent=11 // pred_check
          %p199 = pneg %p135
        $region22: #{tpu_custom_call.1} parent=11 // pred_check_branch
          %201 = sbr.rel (%p199) target = $region24
        $region23: #{tpu_custom_call.1} parent=11 // pred_region
          %p202 = scmp.lt.s32.totalorder %s27, 0
          %s203 = scalar_select %p202, %s27, 0
          %s204 = scalar_lea.vmem %s3, %s203
        $region24: #{tpu_custom_call.1} parent=11 // pred_fallthru
          _
      $region12: #{tpu_custom_call.1} parent=5 // pred_fallthru
        _
      %p205 = scmp.lt.s32.totalorder %s17, 2
      // Predicated region
      $region25: #{tpu_custom_call.1} parent=5 // pred_check
        %p206 = pneg %p205
      $region26: #{tpu_custom_call.1} parent=5 // pred_check_branch
        %208 = sbr.rel (%p206) target = $region28
      $region27: #{tpu_custom_call.1} parent=5 // pred_region
        // Predicated region
        $region29: #{tpu_custom_call.1} parent=27 // pred_check
          %p209 = pneg %p51
        $region30: #{tpu_custom_call.1} parent=27 // pred_check_branch
          %211 = sbr.rel (%p209) target = $region32
        $region31: #{tpu_custom_call.1} parent=27 // pred_region
          %s212 = sand.u32 %s41, 1
          %s213 = scalar_lea.sflag [#allocation4], %s212
          %s214 = sand.u32 %s41, 1
          %s215 = smul.addr %s214, 128
          %s216 = scalar_lea.vmem [#allocation3], %s215
          %s218 = ssub.s32 2048, 2048
          %219 = vsyncadd %s213, %s218
          %s220 = smul.addr %s24, 32
          %s221 = sadd.s32 %s25, %s220
          %s222 = smul.addr %s221, 64
          %s223 = scalar_lea.hbm %s0, %s222
          %s224 = sshll.u32 %s216, 4
          %s225 = int_to_ptr.vmem [resolvable:$true] %s224
          %230 = dma.hbm_to_vmem [thread:$0]  %s223, 2048, %s225, %s213, 64, 64, 4
        $region32: #{tpu_custom_call.1} parent=27 // pred_fallthru
          _
      $region28: #{tpu_custom_call.1} parent=5 // pred_fallthru
        _
      %p231 = scmp.le.s32.totalorder 1, %s17
      %p232 = scmp.lt.s32.totalorder %s17, 3
      %p233 = pnand %p231, %p232
      %p234 = pneg %p233
      // Predicated region
      $region33: #{tpu_custom_call.1} parent=5 // pred_check
        _
      $region34: #{tpu_custom_call.1} parent=5 // pred_check_branch
        %236 = sbr.rel (%p233) target = $region36
      $region35: #{tpu_custom_call.1} parent=5 // pred_region
        %s237 = ssub.s32 %s17, 1
        %s238 = sand.u32 %s44, 1
        %s239 = scalar_lea.sflag [#allocation4], %s238
        %s240 = sand.u32 %s44, 1
        %s241 = smul.addr %s240, 128
        %s242 = scalar_lea.vmem [#allocation3], %s241
        // Predicated region
        $region37: #{tpu_custom_call.1} parent=35 // pred_check
          %p243 = pneg %p57
        $region38: #{tpu_custom_call.1} parent=35 // pred_check_branch
          %245 = sbr.rel (%p243) target = $region40
        $region39: #{tpu_custom_call.1} parent=35 // pred_region
          %246 = dma.done %s239, 2048
        $region40: #{tpu_custom_call.1} parent=35 // pred_fallthru
          _
        // Predicated region
        $region41: #{tpu_custom_call.1} parent=35 // pred_check
          %p247 = pneg %p83
        $region42: #{tpu_custom_call.1} parent=35 // pred_check_branch
          %249 = sbr.rel (%p247) target = $region44
        $region43: #{tpu_custom_call.1} parent=35 // pred_region
          %250 = dma.done [#allocation7], 144
        $region44: #{tpu_custom_call.1} parent=35 // pred_fallthru
          _
        %s251 = sand.u32 %s44, 1
        %s252 = scalar_lea.sflag [#allocation4], %s251
        %s253 = sand.u32 %s44, 1
        %s254 = smul.addr %s253, 128
        %s255 = scalar_lea.vmem [#allocation3], %s254
        %p256 = pneg %p57
        %p257 = pneg %p54
        %p258 = pneg %p83
        %p259 = pneg %p80
        %p260 = scmp.lt.s32.totalorder %s27, 0
        %s261 = scalar_select %p260, %s27, 0
        %s262 = scalar_lea.vmem %s2, %s261
        %p263 = pneg %p109
        %p264 = pneg %p106
        %p265 = scmp.lt.s32.totalorder %s27, 0
        %s266 = scalar_select %p265, %s27, 0
        %s267 = scalar_lea.vmem %s3, %s266
        %p268 = pneg %p135
        %p269 = pneg %p132
        %p270 = pneg %p163
        %p271 = pneg %p160
        %s272 = sand.u32 %s150, 1
        %s273 = scalar_lea.sflag [#allocation5], %s272
        %s274 = sand.u32 %s150, 1
        %s275 = smul.addr %s274, 128
        %s276 = scalar_lea.vmem [#allocation8], %s275
        %p277 = scmp.lt.s32.totalorder %s27, 0
        %s278 = scalar_select %p277, %s27, 0
        %s279 = scalar_lea.vmem %s2, %s278
        %p280 = scmp.lt.s32.totalorder %s27, 0
        %s281 = scalar_select %p280, %s27, 0
        %s282 = scalar_lea.vmem %s3, %s281
        %vm284 = vcmask 130048
        %285 = vst.msk [vmem:[#allocation2] sm:$0xff] %vm284, 0
        %286 = vst.msk [vmem:[#allocation2 + $0x8] sm:$0xff] %vm284, 0
        %287 = vst.msk [vmem:[#allocation2 + $0x10] sm:$0xff] %vm284, 0
        %288 = vst.msk [vmem:[#allocation2 + $0x18] sm:$0xff] %vm284, 0
        %289 = vst.msk [vmem:[#allocation2 + $0x20] sm:$0xff] %vm284, 0
        %290 = vst.msk [vmem:[#allocation2 + $0x28] sm:$0xff] %vm284, 0
        %291 = vst.msk [vmem:[#allocation2 + $0x30] sm:$0xff] %vm284, 0
        %292 = vst.msk [vmem:[#allocation2 + $0x38] sm:$0xff] %vm284, 0
        %293 = vst.msk [vmem:[#allocation2 + $0x40] sm:$0xff] %vm284, 0
        %294 = vst.msk [vmem:[#allocation2 + $0x48] sm:$0xff] %vm284, 0
        %295 = vst.msk [vmem:[#allocation2 + $0x50] sm:$0xff] %vm284, 0
        %296 = vst.msk [vmem:[#allocation2 + $0x58] sm:$0xff] %vm284, 0
        %297 = vst.msk [vmem:[#allocation2 + $0x60] sm:$0xff] %vm284, 0
        %298 = vst.msk [vmem:[#allocation2 + $0x68] sm:$0xff] %vm284, 0
        %299 = vst.msk [vmem:[#allocation2 + $0x70] sm:$0xff] %vm284, 0
        %300 = vst.msk [vmem:[#allocation2 + $0x78] sm:$0xff] %vm284, 0
        %301 = vst.msk [vmem:[#allocation2 + $0x80] sm:$0xff] %vm284, 0
        %302 = vst.msk [vmem:[#allocation2 + $0x88] sm:$0xff] %vm284, 0
        %303 = vst.msk [vmem:[#allocation2 + $0x90] sm:$0xff] %vm284, 0
        %304 = vst.msk [vmem:[#allocation2 + $0x98] sm:$0xff] %vm284, 0
        %305 = vst.msk [vmem:[#allocation2 + $0xa0] sm:$0xff] %vm284, 0
        %306 = vst.msk [vmem:[#allocation2 + $0xa8] sm:$0xff] %vm284, 0
        %307 = vst.msk [vmem:[#allocation2 + $0xb0] sm:$0xff] %vm284, 0
        %308 = vst.msk [vmem:[#allocation2 + $0xb8] sm:$0xff] %vm284, 0
        %309 = vst.msk [vmem:[#allocation2 + $0xc0] sm:$0xff] %vm284, 0
        %310 = vst.msk [vmem:[#allocation2 + $0xc8] sm:$0xff] %vm284, 0
        %311 = vst.msk [vmem:[#allocation2 + $0xd0] sm:$0xff] %vm284, 0
        %312 = vst.msk [vmem:[#allocation2 + $0xd8] sm:$0xff] %vm284, 0
        %313 = vst.msk [vmem:[#allocation2 + $0xe0] sm:$0xff] %vm284, 0
        %314 = vst.msk [vmem:[#allocation2 + $0xe8] sm:$0xff] %vm284, 0
        %315 = vst.msk [vmem:[#allocation2 + $0xf0] sm:$0xff] %vm284, 0
        %316 = vst.msk [vmem:[#allocation2 + $0xf8] sm:$0xff] %vm284, 0
        %317 = vst.msk [vmem:[#allocation2 + $0x100] sm:$0xff] %vm284, 0
        %318 = vst.msk [vmem:[#allocation2 + $0x108] sm:$0xff] %vm284, 0
        %319 = vst.msk [vmem:[#allocation2 + $0x110] sm:$0xff] %vm284, 0
        %320 = vst.msk [vmem:[#allocation2 + $0x118] sm:$0xff] %vm284, 0
        %321 = vst.msk [vmem:[#allocation2 + $0x120] sm:$0xff] %vm284, 0
        %322 = vst.msk [vmem:[#allocation2 + $0x128] sm:$0xff] %vm284, 0
        %323 = vst.msk [vmem:[#allocation2 + $0x130] sm:$0xff] %vm284, 0
        %324 = vst.msk [vmem:[#allocation2 + $0x138] sm:$0xff] %vm284, 0
        %325 = vst.msk [vmem:[#allocation2 + $0x140] sm:$0xff] %vm284, 0
        %326 = vst.msk [vmem:[#allocation2 + $0x148] sm:$0xff] %vm284, 0
        %327 = vst.msk [vmem:[#allocation2 + $0x150] sm:$0xff] %vm284, 0
        %328 = vst.msk [vmem:[#allocation2 + $0x158] sm:$0xff] %vm284, 0
        %329 = vst.msk [vmem:[#allocation2 + $0x160] sm:$0xff] %vm284, 0
        %330 = vst.msk [vmem:[#allocation2 + $0x168] sm:$0xff] %vm284, 0
        %331 = vst.msk [vmem:[#allocation2 + $0x170] sm:$0xff] %vm284, 0
        %332 = vst.msk [vmem:[#allocation2 + $0x178] sm:$0xff] %vm284, 0
        %333 = vst.msk [vmem:[#allocation2 + $0x180] sm:$0xff] %vm284, 0
        %334 = vst.msk [vmem:[#allocation2 + $0x188] sm:$0xff] %vm284, 0
        %335 = vst.msk [vmem:[#allocation2 + $0x190] sm:$0xff] %vm284, 0
        %336 = vst.msk [vmem:[#allocation2 + $0x198] sm:$0xff] %vm284, 0
        %337 = vst.msk [vmem:[#allocation2 + $0x1a0] sm:$0xff] %vm284, 0
        %338 = vst.msk [vmem:[#allocation2 + $0x1a8] sm:$0xff] %vm284, 0
        %v339 = vld [vmem:[%s242] sm:$0xf]
        %v340 = vld [vmem:[%s242 + $0x4] sm:$0xf]
        %v341 = vld [vmem:[%s242 + $0x8] sm:$0xf]
        %v342 = vld [vmem:[%s242 + $0xc] sm:$0xf]
        %v343 = vld [vmem:[%s242 + $0x10] sm:$0xf]
        %v344 = vld [vmem:[%s242 + $0x14] sm:$0xf]
        %v345 = vld [vmem:[%s242 + $0x18] sm:$0xf]
        %v346 = vld [vmem:[%s242 + $0x1c] sm:$0xf]
        %v347 = vld [vmem:[%s242 + $0x20] sm:$0xf]
        %v348 = vld [vmem:[%s242 + $0x24] sm:$0xf]
        %v349 = vld [vmem:[%s242 + $0x28] sm:$0xf]
        %v350 = vld [vmem:[%s242 + $0x2c] sm:$0xf]
        %v351 = vld [vmem:[%s242 + $0x30] sm:$0xf]
        %v352 = vld [vmem:[%s242 + $0x34] sm:$0xf]
        %v353 = vld [vmem:[%s242 + $0x38] sm:$0xf]
        %v354 = vld [vmem:[%s242 + $0x3c] sm:$0xf]
        %v355 = vld [vmem:[%s242 + $0x40] sm:$0xf]
        %v356 = vld [vmem:[%s242 + $0x44] sm:$0xf]
        %v357 = vld [vmem:[%s242 + $0x48] sm:$0xf]
        %v358 = vld [vmem:[%s242 + $0x4c] sm:$0xf]
        %v359 = vld [vmem:[%s242 + $0x50] sm:$0xf]
        %v360 = vld [vmem:[%s242 + $0x54] sm:$0xf]
        %v361 = vld [vmem:[%s242 + $0x58] sm:$0xf]
        %v362 = vld [vmem:[%s242 + $0x5c] sm:$0xf]
        %v363 = vld [vmem:[%s242 + $0x60] sm:$0xf]
        %v364 = vld [vmem:[%s242 + $0x64] sm:$0xf]
        %v365 = vld [vmem:[%s242 + $0x68] sm:$0xf]
        %v366 = vld [vmem:[%s242 + $0x6c] sm:$0xf]
        %v367 = vld [vmem:[%s242 + $0x70] sm:$0xf]
        %v368 = vld [vmem:[%s242 + $0x74] sm:$0xf]
        %v369 = vld [vmem:[%s242 + $0x78] sm:$0xf]
        %v370 = vld [vmem:[%s242 + $0x7c] sm:$0xf]
        %v403 = vunpack.c.l.b16 %v339
        %v404 = vunpack.c.l.b16 %v340
        %v405 = vunpack.c.l.b16 %v341
        %v406 = vunpack.c.l.b16 %v342
        %v407 = vunpack.c.l.b16 %v343
        %v408 = vunpack.c.l.b16 %v344
        %v409 = vunpack.c.l.b16 %v345
        %v410 = vunpack.c.l.b16 %v346
        %v411 = vunpack.c.l.b16 %v347
        %v412 = vunpack.c.l.b16 %v348
        %v413 = vunpack.c.l.b16 %v349
        %v414 = vunpack.c.l.b16 %v350
        %v415 = vunpack.c.l.b16 %v351
        %v416 = vunpack.c.l.b16 %v352
        %v417 = vunpack.c.l.b16 %v353
        %v418 = vunpack.c.l.b16 %v354
        %v419 = vunpack.c.l.b16 %v355
        %v420 = vunpack.c.l.b16 %v356
        %v421 = vunpack.c.l.b16 %v357
        %v422 = vunpack.c.l.b16 %v358
        %v423 = vunpack.c.l.b16 %v359
        %v424 = vunpack.c.l.b16 %v360
        %v425 = vunpack.c.l.b16 %v361
        %v426 = vunpack.c.l.b16 %v362
        %v427 = vunpack.c.l.b16 %v363
        %v428 = vunpack.c.l.b16 %v364
        %v429 = vunpack.c.l.b16 %v365
        %v430 = vunpack.c.l.b16 %v366
        %v431 = vunpack.c.l.b16 %v367
        %v432 = vunpack.c.l.b16 %v368
        %v433 = vunpack.c.l.b16 %v369
        %v434 = vunpack.c.l.b16 %v370
        %v435 = vpack.c.b16 %v404, %v403
        %v436 = vpack.c.b16 %v406, %v405
        %v437 = vpack.c.b16 %v408, %v407
        %v438 = vpack.c.b16 %v410, %v409
        %v439 = vpack.c.b16 %v412, %v411
        %v440 = vpack.c.b16 %v414, %v413
        %v441 = vpack.c.b16 %v416, %v415
        %v442 = vpack.c.b16 %v418, %v417
        %v443 = vpack.c.b16 %v420, %v419
        %v444 = vpack.c.b16 %v422, %v421
        %v445 = vpack.c.b16 %v424, %v423
        %v446 = vpack.c.b16 %v426, %v425
        %v447 = vpack.c.b16 %v428, %v427
        %v448 = vpack.c.b16 %v430, %v429
        %v449 = vpack.c.b16 %v432, %v431
        %v450 = vpack.c.b16 %v434, %v433
        %s467 = scalar_lea.vmem [#allocation2], 24
        %468 = vst.msk [vmem:[%s467 + $0x8] sm:$0xff] %vm284, %v435
        %469 = vst.msk [vmem:[%s467 + $0x20] sm:$0xff] %vm284, %v436
        %470 = vst.msk [vmem:[%s467 + $0x38] sm:$0xff] %vm284, %v437
        %471 = vst.msk [vmem:[%s467 + $0x50] sm:$0xff] %vm284, %v438
        %472 = vst.msk [vmem:[%s467 + $0x68] sm:$0xff] %vm284, %v439
        %473 = vst.msk [vmem:[%s467 + $0x80] sm:$0xff] %vm284, %v440
        %474 = vst.msk [vmem:[%s467 + $0x98] sm:$0xff] %vm284, %v441
        %475 = vst.msk [vmem:[%s467 + $0xb0] sm:$0xff] %vm284, %v442
        %476 = vst.msk [vmem:[%s467 + $0xc8] sm:$0xff] %vm284, %v443
        %477 = vst.msk [vmem:[%s467 + $0xe0] sm:$0xff] %vm284, %v444
        %478 = vst.msk [vmem:[%s467 + $0xf8] sm:$0xff] %vm284, %v445
        %479 = vst.msk [vmem:[%s467 + $0x110] sm:$0xff] %vm284, %v446
        %480 = vst.msk [vmem:[%s467 + $0x128] sm:$0xff] %vm284, %v447
        %481 = vst.msk [vmem:[%s467 + $0x140] sm:$0xff] %vm284, %v448
        %482 = vst.msk [vmem:[%s467 + $0x158] sm:$0xff] %vm284, %v449
        %483 = vst.msk [vmem:[%s467 + $0x170] sm:$0xff] %vm284, %v450
        %v484 = vld [vmem:[#allocation2] sm:$0xff]
        %v485 = vld [vmem:[#allocation2 + $0x8] sm:$0xff]
        %v486 = vld [vmem:[#allocation2 + $0x10] sm:$0xff]
        %v487 = vld [vmem:[#allocation2 + $0x18] sm:$0xff]
        %v488 = vld [vmem:[#allocation2 + $0x20] sm:$0xff]
        %v489 = vld [vmem:[#allocation2 + $0x28] sm:$0xff]
        %v490 = vld [vmem:[#allocation2 + $0x30] sm:$0xff]
        %v491 = vld [vmem:[#allocation2 + $0x38] sm:$0xff]
        %v492 = vld [vmem:[#allocation2 + $0x40] sm:$0xff]
        %v493 = vld [vmem:[#allocation2 + $0x48] sm:$0xff]
        %v494 = vld [vmem:[#allocation2 + $0x50] sm:$0xff]
        %v495 = vld [vmem:[#allocation2 + $0x58] sm:$0xff]
        %v496 = vld [vmem:[#allocation2 + $0x60] sm:$0xff]
        %v497 = vld [vmem:[#allocation2 + $0x68] sm:$0xff]
        %v498 = vld [vmem:[#allocation2 + $0x70] sm:$0xff]
        %v499 = vld [vmem:[#allocation2 + $0x78] sm:$0xff]
        %v500 = vld [vmem:[#allocation2 + $0x80] sm:$0xff]
        %v501 = vld [vmem:[#allocation2 + $0x88] sm:$0xff]
        %v502 = vld [vmem:[#allocation2 + $0x90] sm:$0xff]
        %v503 = vld [vmem:[#allocation2 + $0x98] sm:$0xff]
        %v504 = vld [vmem:[#allocation2 + $0xa0] sm:$0xff]
        %v505 = vld [vmem:[#allocation2 + $0xa8] sm:$0xff]
        %v506 = vld [vmem:[#allocation2 + $0xb0] sm:$0xff]
        %v507 = vld [vmem:[#allocation2 + $0xb8] sm:$0xff]
        %v508 = vld [vmem:[#allocation2 + $0xc0] sm:$0xff]
        %v509 = vld [vmem:[#allocation2 + $0xc8] sm:$0xff]
        %v510 = vld [vmem:[#allocation2 + $0xd0] sm:$0xff]
        %v511 = vld [vmem:[#allocation2 + $0xd8] sm:$0xff]
        %v512 = vld [vmem:[#allocation2 + $0xe0] sm:$0xff]
        %v513 = vld [vmem:[#allocation2 + $0xe8] sm:$0xff]
        %v514 = vld [vmem:[#allocation2 + $0xf0] sm:$0xff]
        %v515 = vld [vmem:[#allocation2 + $0xf8] sm:$0xff]
        %v516 = vld [vmem:[#allocation2 + $0x100] sm:$0xff]
        %v517 = vld [vmem:[#allocation2 + $0x108] sm:$0xff]
        %v518 = vld [vmem:[#allocation2 + $0x110] sm:$0xff]
        %v519 = vld [vmem:[#allocation2 + $0x118] sm:$0xff]
        %v520 = vld [vmem:[#allocation2 + $0x120] sm:$0xff]
        %v521 = vld [vmem:[#allocation2 + $0x128] sm:$0xff]
        %v522 = vld [vmem:[#allocation2 + $0x130] sm:$0xff]
        %v523 = vld [vmem:[#allocation2 + $0x138] sm:$0xff]
        %v524 = vld [vmem:[#allocation2 + $0x140] sm:$0xff]
        %v525 = vld [vmem:[#allocation2 + $0x148] sm:$0xff]
        %v526 = vld [vmem:[#allocation2 + $0x150] sm:$0xff]
        %v527 = vld [vmem:[#allocation2 + $0x158] sm:$0xff]
        %v528 = vld [vmem:[#allocation2 + $0x160] sm:$0xff]
        %v529 = vld [vmem:[#allocation2 + $0x168] sm:$0xff]
        %v530 = vld [vmem:[#allocation2 + $0x170] sm:$0xff]
        %v531 = vld [vmem:[#allocation2 + $0x178] sm:$0xff]
        %v532 = vld [vmem:[#allocation2 + $0x180] sm:$0xff]
        %v533 = vld [vmem:[#allocation2 + $0x188] sm:$0xff]
        %v534 = vld [vmem:[#allocation2 + $0x190] sm:$0xff]
        %v535 = vld [vmem:[#allocation2 + $0x198] sm:$0xff]
        %v536 = vld [vmem:[#allocation2 + $0x1a0] sm:$0xff]
        %v537 = vld [vmem:[#allocation2 + $0x1a8] sm:$0xff]
        %v538 = vunpack.c.h.bf16 %v484
        %v539 = vunpack.c.l.bf16 %v485
        %v540 = vunpack.c.h.bf16 %v485
        %v541 = vunpack.c.l.bf16 %v486
        %v542 = vunpack.c.h.bf16 %v487
        %v543 = vunpack.c.l.bf16 %v488
        %v544 = vunpack.c.h.bf16 %v488
        %v545 = vunpack.c.l.bf16 %v489
        %v546 = vunpack.c.h.bf16 %v490
        %v547 = vunpack.c.l.bf16 %v491
        %v548 = vunpack.c.h.bf16 %v491
        %v549 = vunpack.c.l.bf16 %v492
        %v550 = vunpack.c.h.bf16 %v493
        %v551 = vunpack.c.l.bf16 %v494
        %v552 = vunpack.c.h.bf16 %v494
        %v553 = vunpack.c.l.bf16 %v495
        %v554 = vunpack.c.h.bf16 %v496
        %v555 = vunpack.c.l.bf16 %v497
        %v556 = vunpack.c.h.bf16 %v497
        %v557 = vunpack.c.l.bf16 %v498
        %v558 = vunpack.c.h.bf16 %v499
        %v559 = vunpack.c.l.bf16 %v500
        %v560 = vunpack.c.h.bf16 %v500
        %v561 = vunpack.c.l.bf16 %v501
        %v562 = vunpack.c.h.bf16 %v502
        %v563 = vunpack.c.l.bf16 %v503
        %v564 = vunpack.c.h.bf16 %v503
        %v565 = vunpack.c.l.bf16 %v504
        %v566 = vunpack.c.h.bf16 %v505
        %v567 = vunpack.c.l.bf16 %v506
        %v568 = vunpack.c.h.bf16 %v506
        %v569 = vunpack.c.l.bf16 %v507
        %v570 = vunpack.c.h.bf16 %v508
        %v571 = vunpack.c.l.bf16 %v509
        %v572 = vunpack.c.h.bf16 %v509
        %v573 = vunpack.c.l.bf16 %v510
        %v574 = vunpack.c.h.bf16 %v511
        %v575 = vunpack.c.l.bf16 %v512
        %v576 = vunpack.c.h.bf16 %v512
        %v577 = vunpack.c.l.bf16 %v513
        %v578 = vunpack.c.h.bf16 %v514
        %v579 = vunpack.c.l.bf16 %v515
        %v580 = vunpack.c.h.bf16 %v515
        %v581 = vunpack.c.l.bf16 %v516
        %v582 = vunpack.c.h.bf16 %v517
        %v583 = vunpack.c.l.bf16 %v518
        %v584 = vunpack.c.h.bf16 %v518
        %v585 = vunpack.c.l.bf16 %v519
        %v586 = vunpack.c.h.bf16 %v520
        %v587 = vunpack.c.l.bf16 %v521
        %v588 = vunpack.c.h.bf16 %v521
        %v589 = vunpack.c.l.bf16 %v522
        %v590 = vunpack.c.h.bf16 %v523
        %v591 = vunpack.c.l.bf16 %v524
        %v592 = vunpack.c.h.bf16 %v524
        %v593 = vunpack.c.l.bf16 %v525
        %v594 = vunpack.c.h.bf16 %v526
        %v595 = vunpack.c.l.bf16 %v527
        %v596 = vunpack.c.h.bf16 %v527
        %v597 = vunpack.c.l.bf16 %v528
        %v598 = vunpack.c.h.bf16 %v529
        %v599 = vunpack.c.l.bf16 %v530
        %v600 = vunpack.c.h.bf16 %v530
        %v601 = vunpack.c.l.bf16 %v531
        %v602 = vld [vmem:[#allocation6] sm:$0x1]
        %v604 = vlaneseq
        %v605 = vshrl.u32 %v604, 7
        %v606 = vsub.s32 0, %v605
        %v607 = vrot.slane %v602, %v606
        %v609 = vmul.f32 %v538, %v607
        %v610 = vmul.f32 %v539, %v607
        %v611 = vmul.f32 %v540, %v607
        %v612 = vmul.f32 %v542, %v607
        %v613 = vmul.f32 %v543, %v607
        %v614 = vmul.f32 %v544, %v607
        %v615 = vmul.f32 %v546, %v607
        %v616 = vmul.f32 %v547, %v607
        %v617 = vmul.f32 %v548, %v607
        %v618 = vmul.f32 %v550, %v607
        %v619 = vmul.f32 %v551, %v607
        %v620 = vmul.f32 %v552, %v607
        %v621 = vmul.f32 %v554, %v607
        %v622 = vmul.f32 %v555, %v607
        %v623 = vmul.f32 %v556, %v607
        %v624 = vmul.f32 %v558, %v607
        %v625 = vmul.f32 %v559, %v607
        %v626 = vmul.f32 %v560, %v607
        %v627 = vmul.f32 %v562, %v607
        %v628 = vmul.f32 %v563, %v607
        %v629 = vmul.f32 %v564, %v607
        %v630 = vmul.f32 %v566, %v607
        %v631 = vmul.f32 %v567, %v607
        %v632 = vmul.f32 %v568, %v607
        %v633 = vmul.f32 %v570, %v607
        %v634 = vmul.f32 %v571, %v607
        %v635 = vmul.f32 %v572, %v607
        %v636 = vmul.f32 %v574, %v607
        %v637 = vmul.f32 %v575, %v607
        %v638 = vmul.f32 %v576, %v607
        %v639 = vmul.f32 %v578, %v607
        %v640 = vmul.f32 %v579, %v607
        %v641 = vmul.f32 %v580, %v607
        %v642 = vmul.f32 %v582, %v607
        %v643 = vmul.f32 %v583, %v607
        %v644 = vmul.f32 %v584, %v607
        %v645 = vmul.f32 %v586, %v607
        %v646 = vmul.f32 %v587, %v607
        %v647 = vmul.f32 %v588, %v607
        %v648 = vmul.f32 %v590, %v607
        %v649 = vmul.f32 %v591, %v607
        %v650 = vmul.f32 %v592, %v607
        %v651 = vmul.f32 %v594, %v607
        %v652 = vmul.f32 %v595, %v607
        %v653 = vmul.f32 %v596, %v607
        %v654 = vmul.f32 %v598, %v607
        %v655 = vmul.f32 %v599, %v607
        %v656 = vmul.f32 %v600, %v607
        %v657 = vadd.f32 %v609, 0.0
        %v658 = vadd.f32 %v610, 0.0
        %v659 = vadd.f32 %v611, 0.0
        %v660 = vadd.f32 %v612, 0.0
        %v661 = vadd.f32 %v613, 0.0
        %v662 = vadd.f32 %v614, 0.0
        %v663 = vadd.f32 %v615, 0.0
        %v664 = vadd.f32 %v616, 0.0
        %v665 = vadd.f32 %v617, 0.0
        %v666 = vadd.f32 %v618, 0.0
        %v667 = vadd.f32 %v619, 0.0
        %v668 = vadd.f32 %v620, 0.0
        %v669 = vadd.f32 %v621, 0.0
        %v670 = vadd.f32 %v622, 0.0
        %v671 = vadd.f32 %v623, 0.0
        %v672 = vadd.f32 %v624, 0.0
        %v673 = vadd.f32 %v625, 0.0
        %v674 = vadd.f32 %v626, 0.0
        %v675 = vadd.f32 %v627, 0.0
        %v676 = vadd.f32 %v628, 0.0
        %v677 = vadd.f32 %v629, 0.0
        %v678 = vadd.f32 %v630, 0.0
        %v679 = vadd.f32 %v631, 0.0
        %v680 = vadd.f32 %v632, 0.0
        %v681 = vadd.f32 %v633, 0.0
        %v682 = vadd.f32 %v634, 0.0
        %v683 = vadd.f32 %v635, 0.0
        %v684 = vadd.f32 %v636, 0.0
        %v685 = vadd.f32 %v637, 0.0
        %v686 = vadd.f32 %v638, 0.0
        %v687 = vadd.f32 %v639, 0.0
        %v688 = vadd.f32 %v640, 0.0
        %v689 = vadd.f32 %v641, 0.0
        %v690 = vadd.f32 %v642, 0.0
        %v691 = vadd.f32 %v643, 0.0
        %v692 = vadd.f32 %v644, 0.0
        %v693 = vadd.f32 %v645, 0.0
        %v694 = vadd.f32 %v646, 0.0
        %v695 = vadd.f32 %v647, 0.0
        %v696 = vadd.f32 %v648, 0.0
        %v697 = vadd.f32 %v649, 0.0
        %v698 = vadd.f32 %v650, 0.0
        %v699 = vadd.f32 %v651, 0.0
        %v700 = vadd.f32 %v652, 0.0
        %v701 = vadd.f32 %v653, 0.0
        %v702 = vadd.f32 %v654, 0.0
        %v703 = vadd.f32 %v655, 0.0
        %v704 = vadd.f32 %v656, 0.0
        %s705 = scalar_lea.vmem [#allocation6], 1
        %v706 = vld [vmem:[%s705] sm:$0x1]
        %v708 = vlaneseq
        %v709 = vshrl.u32 %v708, 7
        %v710 = vsub.s32 0, %v709
        %v711 = vrot.slane %v706, %v710
        %v713 = vmul.f32 %v539, %v711
        %v714 = vmul.f32 %v540, %v711
        %v715 = vmul.f32 %v543, %v711
        %v716 = vmul.f32 %v544, %v711
        %v717 = vmul.f32 %v547, %v711
        %v718 = vmul.f32 %v548, %v711
        %v719 = vmul.f32 %v551, %v711
        %v720 = vmul.f32 %v552, %v711
        %v721 = vmul.f32 %v555, %v711
        %v722 = vmul.f32 %v556, %v711
        %v723 = vmul.f32 %v559, %v711
        %v724 = vmul.f32 %v560, %v711
        %v725 = vmul.f32 %v563, %v711
        %v726 = vmul.f32 %v564, %v711
        %v727 = vmul.f32 %v567, %v711
        %v728 = vmul.f32 %v568, %v711
        %v729 = vmul.f32 %v571, %v711
        %v730 = vmul.f32 %v572, %v711
        %v731 = vmul.f32 %v575, %v711
        %v732 = vmul.f32 %v576, %v711
        %v733 = vmul.f32 %v579, %v711
        %v734 = vmul.f32 %v580, %v711
        %v735 = vmul.f32 %v583, %v711
        %v736 = vmul.f32 %v584, %v711
        %v737 = vmul.f32 %v587, %v711
        %v738 = vmul.f32 %v588, %v711
        %v739 = vmul.f32 %v591, %v711
        %v740 = vmul.f32 %v592, %v711
        %v741 = vmul.f32 %v595, %v711
        %v742 = vmul.f32 %v596, %v711
        %v743 = vmul.f32 %v599, %v711
        %v744 = vmul.f32 %v600, %v711
        %vm777 = vcmask 1046528
        %v778 = vrot.slane %v713, 1
        %v779 = vrot.slane %v714, 1
        %v780 = vsel %vm777, %v778, %v779
        %v781 = vrot.slane %v715, 1
        %v782 = vrot.slane %v716, 1
        %v783 = vsel %vm777, %v781, %v782
        %v784 = vrot.slane %v717, 1
        %v785 = vrot.slane %v718, 1
        %v786 = vsel %vm777, %v784, %v785
        %v787 = vrot.slane %v719, 1
        %v788 = vrot.slane %v720, 1
        %v789 = vsel %vm777, %v787, %v788
        %v790 = vrot.slane %v721, 1
        %v791 = vrot.slane %v722, 1
        %v792 = vsel %vm777, %v790, %v791
        %v793 = vrot.slane %v723, 1
        %v794 = vrot.slane %v724, 1
        %v795 = vsel %vm777, %v793, %v794
        %v796 = vrot.slane %v725, 1
        %v797 = vrot.slane %v726, 1
        %v798 = vsel %vm777, %v796, %v797
        %v799 = vrot.slane %v727, 1
        %v800 = vrot.slane %v728, 1
        %v801 = vsel %vm777, %v799, %v800
        %v802 = vrot.slane %v729, 1
        %v803 = vrot.slane %v730, 1
        %v804 = vsel %vm777, %v802, %v803
        %v805 = vrot.slane %v731, 1
        %v806 = vrot.slane %v732, 1
        %v807 = vsel %vm777, %v805, %v806
        %v808 = vrot.slane %v733, 1
        %v809 = vrot.slane %v734, 1
        %v810 = vsel %vm777, %v808, %v809
        %v811 = vrot.slane %v735, 1
        %v812 = vrot.slane %v736, 1
        %v813 = vsel %vm777, %v811, %v812
        %v814 = vrot.slane %v737, 1
        %v815 = vrot.slane %v738, 1
        %v816 = vsel %vm777, %v814, %v815
        %v817 = vrot.slane %v739, 1
        %v818 = vrot.slane %v740, 1
        %v819 = vsel %vm777, %v817, %v818
        %v820 = vrot.slane %v741, 1
        %v821 = vrot.slane %v742, 1
        %v822 = vsel %vm777, %v820, %v821
        %v823 = vrot.slane %v743, 1
        %v824 = vrot.slane %v744, 1
        %v825 = vsel %vm777, %v823, %v824
        %v874 = vadd.f32 %v657, %v778
        %v875 = vadd.f32 %v658, %v780
        %v876 = vadd.f32 %v659, %v779
        %v877 = vadd.f32 %v660, %v781
        %v878 = vadd.f32 %v661, %v783
        %v879 = vadd.f32 %v662, %v782
        %v880 = vadd.f32 %v663, %v784
        %v881 = vadd.f32 %v664, %v786
        %v882 = vadd.f32 %v665, %v785
        %v883 = vadd.f32 %v666, %v787
        %v884 = vadd.f32 %v667, %v789
        %v885 = vadd.f32 %v668, %v788
        %v886 = vadd.f32 %v669, %v790
        %v887 = vadd.f32 %v670, %v792
        %v888 = vadd.f32 %v671, %v791
        %v889 = vadd.f32 %v672, %v793
        %v890 = vadd.f32 %v673, %v795
        %v891 = vadd.f32 %v674, %v794
        %v892 = vadd.f32 %v675, %v796
        %v893 = vadd.f32 %v676, %v798
        %v894 = vadd.f32 %v677, %v797
        %v895 = vadd.f32 %v678, %v799
        %v896 = vadd.f32 %v679, %v801
        %v897 = vadd.f32 %v680, %v800
        %v898 = vadd.f32 %v681, %v802
        %v899 = vadd.f32 %v682, %v804
        %v900 = vadd.f32 %v683, %v803
        %v901 = vadd.f32 %v684, %v805
        %v902 = vadd.f32 %v685, %v807
        %v903 = vadd.f32 %v686, %v806
        %v904 = vadd.f32 %v687, %v808
        %v905 = vadd.f32 %v688, %v810
        %v906 = vadd.f32 %v689, %v809
        %v907 = vadd.f32 %v690, %v811
        %v908 = vadd.f32 %v691, %v813
        %v909 = vadd.f32 %v692, %v812
        %v910 = vadd.f32 %v693, %v814
        %v911 = vadd.f32 %v694, %v816
        %v912 = vadd.f32 %v695, %v815
        %v913 = vadd.f32 %v696, %v817
        %v914 = vadd.f32 %v697, %v819
        %v915 = vadd.f32 %v698, %v818
        %v916 = vadd.f32 %v699, %v820
        %v917 = vadd.f32 %v700, %v822
        %v918 = vadd.f32 %v701, %v821
        %v919 = vadd.f32 %v702, %v823
        %v920 = vadd.f32 %v703, %v825
        %v921 = vadd.f32 %v704, %v824
        %s922 = scalar_lea.vmem [#allocation6], 2
        %v923 = vld [vmem:[%s922] sm:$0x1]
        %v925 = vlaneseq
        %v926 = vshrl.u32 %v925, 7
        %v927 = vsub.s32 0, %v926
        %v928 = vrot.slane %v923, %v927
        %v930 = vmul.f32 %v539, %v928
        %v931 = vmul.f32 %v540, %v928
        %v932 = vmul.f32 %v541, %v928
        %v933 = vmul.f32 %v543, %v928
        %v934 = vmul.f32 %v544, %v928
        %v935 = vmul.f32 %v545, %v928
        %v936 = vmul.f32 %v547, %v928
        %v937 = vmul.f32 %v548, %v928
        %v938 = vmul.f32 %v549, %v928
        %v939 = vmul.f32 %v551, %v928
        %v940 = vmul.f32 %v552, %v928
        %v941 = vmul.f32 %v553, %v928
        %v942 = vmul.f32 %v555, %v928
        %v943 = vmul.f32 %v556, %v928
        %v944 = vmul.f32 %v557, %v928
        %v945 = vmul.f32 %v559, %v928
        %v946 = vmul.f32 %v560, %v928
        %v947 = vmul.f32 %v561, %v928
        %v948 = vmul.f32 %v563, %v928
        %v949 = vmul.f32 %v564, %v928
        %v950 = vmul.f32 %v565, %v928
        %v951 = vmul.f32 %v567, %v928
        %v952 = vmul.f32 %v568, %v928
        %v953 = vmul.f32 %v569, %v928
        %v954 = vmul.f32 %v571, %v928
        %v955 = vmul.f32 %v572, %v928
        %v956 = vmul.f32 %v573, %v928
        %v957 = vmul.f32 %v575, %v928
        %v958 = vmul.f32 %v576, %v928
        %v959 = vmul.f32 %v577, %v928
        %v960 = vmul.f32 %v579, %v928
        %v961 = vmul.f32 %v580, %v928
        %v962 = vmul.f32 %v581, %v928
        %v963 = vmul.f32 %v583, %v928
        %v964 = vmul.f32 %v584, %v928
        %v965 = vmul.f32 %v585, %v928
        %v966 = vmul.f32 %v587, %v928
        %v967 = vmul.f32 %v588, %v928
        %v968 = vmul.f32 %v589, %v928
        %v969 = vmul.f32 %v591, %v928
        %v970 = vmul.f32 %v592, %v928
        %v971 = vmul.f32 %v593, %v928
        %v972 = vmul.f32 %v595, %v928
        %v973 = vmul.f32 %v596, %v928
        %v974 = vmul.f32 %v597, %v928
        %v975 = vmul.f32 %v599, %v928
        %v976 = vmul.f32 %v600, %v928
        %v977 = vmul.f32 %v601, %v928
        %vm1026 = vcmask 1045504
        %v1027 = vrot.slane %v930, 2
        %v1028 = vrot.slane %v931, 2
        %v1029 = vsel %vm1026, %v1027, %v1028
        %v1030 = vrot.slane %v932, 2
        %v1031 = vsel %vm1026, %v1028, %v1030
        %v1032 = vrot.slane %v933, 2
        %v1033 = vrot.slane %v934, 2
        %v1034 = vsel %vm1026, %v1032, %v1033
        %v1035 = vrot.slane %v935, 2
        %v1036 = vsel %vm1026, %v1033, %v1035
        %v1037 = vrot.slane %v936, 2
        %v1038 = vrot.slane %v937, 2
        %v1039 = vsel %vm1026, %v1037, %v1038
        %v1040 = vrot.slane %v938, 2
        %v1041 = vsel %vm1026, %v1038, %v1040
        %v1042 = vrot.slane %v939, 2
        %v1043 = vrot.slane %v940, 2
        %v1044 = vsel %vm1026, %v1042, %v1043
        %v1045 = vrot.slane %v941, 2
        %v1046 = vsel %vm1026, %v1043, %v1045
        %v1047 = vrot.slane %v942, 2
        %v1048 = vrot.slane %v943, 2
        %v1049 = vsel %vm1026, %v1047, %v1048
        %v1050 = vrot.slane %v944, 2
        %v1051 = vsel %vm1026, %v1048, %v1050
        %v1052 = vrot.slane %v945, 2
        %v1053 = vrot.slane %v946, 2
        %v1054 = vsel %vm1026, %v1052, %v1053
        %v1055 = vrot.slane %v947, 2
        %v1056 = vsel %vm1026, %v1053, %v1055
        %v1057 = vrot.slane %v948, 2
        %v1058 = vrot.slane %v949, 2
        %v1059 = vsel %vm1026, %v1057, %v1058
        %v1060 = vrot.slane %v950, 2
        %v1061 = vsel %vm1026, %v1058, %v1060
        %v1062 = vrot.slane %v951, 2
        %v1063 = vrot.slane %v952, 2
        %v1064 = vsel %vm1026, %v1062, %v1063
        %v1065 = vrot.slane %v953, 2
        %v1066 = vsel %vm1026, %v1063, %v1065
        %v1067 = vrot.slane %v954, 2
        %v1068 = vrot.slane %v955, 2
        %v1069 = vsel %vm1026, %v1067, %v1068
        %v1070 = vrot.slane %v956, 2
        %v1071 = vsel %vm1026, %v1068, %v1070
        %v1072 = vrot.slane %v957, 2
        %v1073 = vrot.slane %v958, 2
        %v1074 = vsel %vm1026, %v1072, %v1073
        %v1075 = vrot.slane %v959, 2
        %v1076 = vsel %vm1026, %v1073, %v1075
        %v1077 = vrot.slane %v960, 2
        %v1078 = vrot.slane %v961, 2
        %v1079 = vsel %vm1026, %v1077, %v1078
        %v1080 = vrot.slane %v962, 2
        %v1081 = vsel %vm1026, %v1078, %v1080
        %v1082 = vrot.slane %v963, 2
        %v1083 = vrot.slane %v964, 2
        %v1084 = vsel %vm1026, %v1082, %v1083
        %v1085 = vrot.slane %v965, 2
        %v1086 = vsel %vm1026, %v1083, %v1085
        %v1087 = vrot.slane %v966, 2
        %v1088 = vrot.slane %v967, 2
        %v1089 = vsel %vm1026, %v1087, %v1088
        %v1090 = vrot.slane %v968, 2
        %v1091 = vsel %vm1026, %v1088, %v1090
        %v1092 = vrot.slane %v969, 2
        %v1093 = vrot.slane %v970, 2
        %v1094 = vsel %vm1026, %v1092, %v1093
        %v1095 = vrot.slane %v971, 2
        %v1096 = vsel %vm1026, %v1093, %v1095
        %v1097 = vrot.slane %v972, 2
        %v1098 = vrot.slane %v973, 2
        %v1099 = vsel %vm1026, %v1097, %v1098
        %v1100 = vrot.slane %v974, 2
        %v1101 = vsel %vm1026, %v1098, %v1100
        %v1102 = vrot.slane %v975, 2
        %v1103 = vrot.slane %v976, 2
        %v1104 = vsel %vm1026, %v1102, %v1103
        %v1105 = vrot.slane %v977, 2
        %v1106 = vsel %vm1026, %v1103, %v1105
        %v1155 = vadd.f32 %v874, %v1027
        %v1156 = vadd.f32 %v875, %v1029
        %v1157 = vadd.f32 %v876, %v1031
        %v1158 = vadd.f32 %v877, %v1032
        %v1159 = vadd.f32 %v878, %v1034
        %v1160 = vadd.f32 %v879, %v1036
        %v1161 = vadd.f32 %v880, %v1037
        %v1162 = vadd.f32 %v881, %v1039
        %v1163 = vadd.f32 %v882, %v1041
        %v1164 = vadd.f32 %v883, %v1042
        %v1165 = vadd.f32 %v884, %v1044
        %v1166 = vadd.f32 %v885, %v1046
        %v1167 = vadd.f32 %v886, %v1047
        %v1168 = vadd.f32 %v887, %v1049
        %v1169 = vadd.f32 %v888, %v1051
        %v1170 = vadd.f32 %v889, %v1052
        %v1171 = vadd.f32 %v890, %v1054
        %v1172 = vadd.f32 %v891, %v1056
        %v1173 = vadd.f32 %v892, %v1057
        %v1174 = vadd.f32 %v893, %v1059
        %v1175 = vadd.f32 %v894, %v1061
        %v1176 = vadd.f32 %v895, %v1062
        %v1177 = vadd.f32 %v896, %v1064
        %v1178 = vadd.f32 %v897, %v1066
        %v1179 = vadd.f32 %v898, %v1067
        %v1180 = vadd.f32 %v899, %v1069
        %v1181 = vadd.f32 %v900, %v1071
        %v1182 = vadd.f32 %v901, %v1072
        %v1183 = vadd.f32 %v902, %v1074
        %v1184 = vadd.f32 %v903, %v1076
        %v1185 = vadd.f32 %v904, %v1077
        %v1186 = vadd.f32 %v905, %v1079
        %v1187 = vadd.f32 %v906, %v1081
        %v1188 = vadd.f32 %v907, %v1082
        %v1189 = vadd.f32 %v908, %v1084
        %v1190 = vadd.f32 %v909, %v1086
        %v1191 = vadd.f32 %v910, %v1087
        %v1192 = vadd.f32 %v911, %v1089
        %v1193 = vadd.f32 %v912, %v1091
        %v1194 = vadd.f32 %v913, %v1092
        %v1195 = vadd.f32 %v914, %v1094
        %v1196 = vadd.f32 %v915, %v1096
        %v1197 = vadd.f32 %v916, %v1097
        %v1198 = vadd.f32 %v917, %v1099
        %v1199 = vadd.f32 %v918, %v1101
        %v1200 = vadd.f32 %v919, %v1102
        %v1201 = vadd.f32 %v920, %v1104
        %v1202 = vadd.f32 %v921, %v1106
        %v1203 = vunpack.c.h.bf16 %v532
        %v1204 = vunpack.c.l.bf16 %v533
        %v1205 = vunpack.c.h.bf16 %v533
        %v1206 = vunpack.c.l.bf16 %v534
        %s1207 = scalar_lea.vmem [#allocation6], 3
        %v1208 = vld [vmem:[%s1207] sm:$0x1]
        %v1210 = vlaneseq
        %v1211 = vshrl.u32 %v1210, 7
        %v1212 = vsub.s32 0, %v1211
        %v1213 = vrot.slane %v1208, %v1212
        %v1215 = vmul.f32 %v542, %v1213
        %v1216 = vmul.f32 %v543, %v1213
        %v1217 = vmul.f32 %v544, %v1213
        %v1218 = vmul.f32 %v546, %v1213
        %v1219 = vmul.f32 %v547, %v1213
        %v1220 = vmul.f32 %v548, %v1213
        %v1221 = vmul.f32 %v550, %v1213
        %v1222 = vmul.f32 %v551, %v1213
        %v1223 = vmul.f32 %v552, %v1213
        %v1224 = vmul.f32 %v554, %v1213
        %v1225 = vmul.f32 %v555, %v1213
        %v1226 = vmul.f32 %v556, %v1213
        %v1227 = vmul.f32 %v558, %v1213
        %v1228 = vmul.f32 %v559, %v1213
        %v1229 = vmul.f32 %v560, %v1213
        %v1230 = vmul.f32 %v562, %v1213
        %v1231 = vmul.f32 %v563, %v1213
        %v1232 = vmul.f32 %v564, %v1213
        %v1233 = vmul.f32 %v566, %v1213
        %v1234 = vmul.f32 %v567, %v1213
        %v1235 = vmul.f32 %v568, %v1213
        %v1236 = vmul.f32 %v570, %v1213
        %v1237 = vmul.f32 %v571, %v1213
        %v1238 = vmul.f32 %v572, %v1213
        %v1239 = vmul.f32 %v574, %v1213
        %v1240 = vmul.f32 %v575, %v1213
        %v1241 = vmul.f32 %v576, %v1213
        %v1242 = vmul.f32 %v578, %v1213
        %v1243 = vmul.f32 %v579, %v1213
        %v1244 = vmul.f32 %v580, %v1213
        %v1245 = vmul.f32 %v582, %v1213
        %v1246 = vmul.f32 %v583, %v1213
        %v1247 = vmul.f32 %v584, %v1213
        %v1248 = vmul.f32 %v586, %v1213
        %v1249 = vmul.f32 %v587, %v1213
        %v1250 = vmul.f32 %v588, %v1213
        %v1251 = vmul.f32 %v590, %v1213
        %v1252 = vmul.f32 %v591, %v1213
        %v1253 = vmul.f32 %v592, %v1213
        %v1254 = vmul.f32 %v594, %v1213
        %v1255 = vmul.f32 %v595, %v1213
        %v1256 = vmul.f32 %v596, %v1213
        %v1257 = vmul.f32 %v598, %v1213
        %v1258 = vmul.f32 %v599, %v1213
        %v1259 = vmul.f32 %v600, %v1213
        %v1260 = vmul.f32 %v1203, %v1213
        %v1261 = vmul.f32 %v1204, %v1213
        %v1262 = vmul.f32 %v1205, %v1213
        %v1263 = vadd.f32 %v1155, %v1215
        %v1264 = vadd.f32 %v1156, %v1216
        %v1265 = vadd.f32 %v1157, %v1217
        %v1266 = vadd.f32 %v1158, %v1218
        %v1267 = vadd.f32 %v1159, %v1219
        %v1268 = vadd.f32 %v1160, %v1220
        %v1269 = vadd.f32 %v1161, %v1221
        %v1270 = vadd.f32 %v1162, %v1222
        %v1271 = vadd.f32 %v1163, %v1223
        %v1272 = vadd.f32 %v1164, %v1224
        %v1273 = vadd.f32 %v1165, %v1225
        %v1274 = vadd.f32 %v1166, %v1226
        %v1275 = vadd.f32 %v1167, %v1227
        %v1276 = vadd.f32 %v1168, %v1228
        %v1277 = vadd.f32 %v1169, %v1229
        %v1278 = vadd.f32 %v1170, %v1230
        %v1279 = vadd.f32 %v1171, %v1231
        %v1280 = vadd.f32 %v1172, %v1232
        %v1281 = vadd.f32 %v1173, %v1233
        %v1282 = vadd.f32 %v1174, %v1234
        %v1283 = vadd.f32 %v1175, %v1235
        %v1284 = vadd.f32 %v1176, %v1236
        %v1285 = vadd.f32 %v1177, %v1237
        %v1286 = vadd.f32 %v1178, %v1238
        %v1287 = vadd.f32 %v1179, %v1239
        %v1288 = vadd.f32 %v1180, %v1240
        %v1289 = vadd.f32 %v1181, %v1241
        %v1290 = vadd.f32 %v1182, %v1242
        %v1291 = vadd.f32 %v1183, %v1243
        %v1292 = vadd.f32 %v1184, %v1244
        %v1293 = vadd.f32 %v1185, %v1245
        %v1294 = vadd.f32 %v1186, %v1246
        %v1295 = vadd.f32 %v1187, %v1247
        %v1296 = vadd.f32 %v1188, %v1248
        %v1297 = vadd.f32 %v1189, %v1249
        %v1298 = vadd.f32 %v1190, %v1250
        %v1299 = vadd.f32 %v1191, %v1251
        %v1300 = vadd.f32 %v1192, %v1252
        %v1301 = vadd.f32 %v1193, %v1253
        %v1302 = vadd.f32 %v1194, %v1254
        %v1303 = vadd.f32 %v1195, %v1255
        %v1304 = vadd.f32 %v1196, %v1256
        %v1305 = vadd.f32 %v1197, %v1257
        %v1306 = vadd.f32 %v1198, %v1258
        %v1307 = vadd.f32 %v1199, %v1259
        %v1308 = vadd.f32 %v1200, %v1260
        %v1309 = vadd.f32 %v1201, %v1261
        %v1310 = vadd.f32 %v1202, %v1262
        %s1311 = scalar_lea.vmem [#allocation6], 4
        %v1312 = vld [vmem:[%s1311] sm:$0x1]
        %v1314 = vlaneseq
        %v1315 = vshrl.u32 %v1314, 7
        %v1316 = vsub.s32 0, %v1315
        %v1317 = vrot.slane %v1312, %v1316
        %v1319 = vmul.f32 %v543, %v1317
        %v1320 = vmul.f32 %v544, %v1317
        %v1321 = vmul.f32 %v547, %v1317
        %v1322 = vmul.f32 %v548, %v1317
        %v1323 = vmul.f32 %v551, %v1317
        %v1324 = vmul.f32 %v552, %v1317
        %v1325 = vmul.f32 %v555, %v1317
        %v1326 = vmul.f32 %v556, %v1317
        %v1327 = vmul.f32 %v559, %v1317
        %v1328 = vmul.f32 %v560, %v1317
        %v1329 = vmul.f32 %v563, %v1317
        %v1330 = vmul.f32 %v564, %v1317
        %v1331 = vmul.f32 %v567, %v1317
        %v1332 = vmul.f32 %v568, %v1317
        %v1333 = vmul.f32 %v571, %v1317
        %v1334 = vmul.f32 %v572, %v1317
        %v1335 = vmul.f32 %v575, %v1317
        %v1336 = vmul.f32 %v576, %v1317
        %v1337 = vmul.f32 %v579, %v1317
        %v1338 = vmul.f32 %v580, %v1317
        %v1339 = vmul.f32 %v583, %v1317
        %v1340 = vmul.f32 %v584, %v1317
        %v1341 = vmul.f32 %v587, %v1317
        %v1342 = vmul.f32 %v588, %v1317
        %v1343 = vmul.f32 %v591, %v1317
        %v1344 = vmul.f32 %v592, %v1317
        %v1345 = vmul.f32 %v595, %v1317
        %v1346 = vmul.f32 %v596, %v1317
        %v1347 = vmul.f32 %v599, %v1317
        %v1348 = vmul.f32 %v600, %v1317
        %v1349 = vmul.f32 %v1204, %v1317
        %v1350 = vmul.f32 %v1205, %v1317
        %v1383 = vrot.slane %v1319, 1
        %v1384 = vrot.slane %v1320, 1
        %v1385 = vsel %vm777, %v1383, %v1384
        %v1386 = vrot.slane %v1321, 1
        %v1387 = vrot.slane %v1322, 1
        %v1388 = vsel %vm777, %v1386, %v1387
        %v1389 = vrot.slane %v1323, 1
        %v1390 = vrot.slane %v1324, 1
        %v1391 = vsel %vm777, %v1389, %v1390
        %v1392 = vrot.slane %v1325, 1
        %v1393 = vrot.slane %v1326, 1
        %v1394 = vsel %vm777, %v1392, %v1393
        %v1395 = vrot.slane %v1327, 1
        %v1396 = vrot.slane %v1328, 1
        %v1397 = vsel %vm777, %v1395, %v1396
        %v1398 = vrot.slane %v1329, 1
        %v1399 = vrot.slane %v1330, 1
        %v1400 = vsel %vm777, %v1398, %v1399
        %v1401 = vrot.slane %v1331, 1
        %v1402 = vrot.slane %v1332, 1
        %v1403 = vsel %vm777, %v1401, %v1402
        %v1404 = vrot.slane %v1333, 1
        %v1405 = vrot.slane %v1334, 1
        %v1406 = vsel %vm777, %v1404, %v1405
        %v1407 = vrot.slane %v1335, 1
        %v1408 = vrot.slane %v1336, 1
        %v1409 = vsel %vm777, %v1407, %v1408
        %v1410 = vrot.slane %v1337, 1
        %v1411 = vrot.slane %v1338, 1
        %v1412 = vsel %vm777, %v1410, %v1411
        %v1413 = vrot.slane %v1339, 1
        %v1414 = vrot.slane %v1340, 1
        %v1415 = vsel %vm777, %v1413, %v1414
        %v1416 = vrot.slane %v1341, 1
        %v1417 = vrot.slane %v1342, 1
        %v1418 = vsel %vm777, %v1416, %v1417
        %v1419 = vrot.slane %v1343, 1
        %v1420 = vrot.slane %v1344, 1
        %v1421 = vsel %vm777, %v1419, %v1420
        %v1422 = vrot.slane %v1345, 1
        %v1423 = vrot.slane %v1346, 1
        %v1424 = vsel %vm777, %v1422, %v1423
        %v1425 = vrot.slane %v1347, 1
        %v1426 = vrot.slane %v1348, 1
        %v1427 = vsel %vm777, %v1425, %v1426
        %v1428 = vrot.slane %v1349, 1
        %v1429 = vrot.slane %v1350, 1
        %v1430 = vsel %vm777, %v1428, %v1429
        %v1479 = vadd.f32 %v1263, %v1383
        %v1480 = vadd.f32 %v1264, %v1385
        %v1481 = vadd.f32 %v1265, %v1384
        %v1482 = vadd.f32 %v1266, %v1386
        %v1483 = vadd.f32 %v1267, %v1388
        %v1484 = vadd.f32 %v1268, %v1387
        %v1485 = vadd.f32 %v1269, %v1389
        %v1486 = vadd.f32 %v1270, %v1391
        %v1487 = vadd.f32 %v1271, %v1390
        %v1488 = vadd.f32 %v1272, %v1392
        %v1489 = vadd.f32 %v1273, %v1394
        %v1490 = vadd.f32 %v1274, %v1393
        %v1491 = vadd.f32 %v1275, %v1395
        %v1492 = vadd.f32 %v1276, %v1397
        %v1493 = vadd.f32 %v1277, %v1396
        %v1494 = vadd.f32 %v1278, %v1398
        %v1495 = vadd.f32 %v1279, %v1400
        %v1496 = vadd.f32 %v1280, %v1399
        %v1497 = vadd.f32 %v1281, %v1401
        %v1498 = vadd.f32 %v1282, %v1403
        %v1499 = vadd.f32 %v1283, %v1402
        %v1500 = vadd.f32 %v1284, %v1404
        %v1501 = vadd.f32 %v1285, %v1406
        %v1502 = vadd.f32 %v1286, %v1405
        %v1503 = vadd.f32 %v1287, %v1407
        %v1504 = vadd.f32 %v1288, %v1409
        %v1505 = vadd.f32 %v1289, %v1408
        %v1506 = vadd.f32 %v1290, %v1410
        %v1507 = vadd.f32 %v1291, %v1412
        %v1508 = vadd.f32 %v1292, %v1411
        %v1509 = vadd.f32 %v1293, %v1413
        %v1510 = vadd.f32 %v1294, %v1415
        %v1511 = vadd.f32 %v1295, %v1414
        %v1512 = vadd.f32 %v1296, %v1416
        %v1513 = vadd.f32 %v1297, %v1418
        %v1514 = vadd.f32 %v1298, %v1417
        %v1515 = vadd.f32 %v1299, %v1419
        %v1516 = vadd.f32 %v1300, %v1421
        %v1517 = vadd.f32 %v1301, %v1420
        %v1518 = vadd.f32 %v1302, %v1422
        %v1519 = vadd.f32 %v1303, %v1424
        %v1520 = vadd.f32 %v1304, %v1423
        %v1521 = vadd.f32 %v1305, %v1425
        %v1522 = vadd.f32 %v1306, %v1427
        %v1523 = vadd.f32 %v1307, %v1426
        %v1524 = vadd.f32 %v1308, %v1428
        %v1525 = vadd.f32 %v1309, %v1430
        %v1526 = vadd.f32 %v1310, %v1429
        %s1527 = scalar_lea.vmem [#allocation6], 5
        %v1528 = vld [vmem:[%s1527] sm:$0x1]
        %v1530 = vlaneseq
        %v1531 = vshrl.u32 %v1530, 7
        %v1532 = vsub.s32 0, %v1531
        %v1533 = vrot.slane %v1528, %v1532
        %v1535 = vmul.f32 %v543, %v1533
        %v1536 = vmul.f32 %v544, %v1533
        %v1537 = vmul.f32 %v545, %v1533
        %v1538 = vmul.f32 %v547, %v1533
        %v1539 = vmul.f32 %v548, %v1533
        %v1540 = vmul.f32 %v549, %v1533
        %v1541 = vmul.f32 %v551, %v1533
        %v1542 = vmul.f32 %v552, %v1533
        %v1543 = vmul.f32 %v553, %v1533
        %v1544 = vmul.f32 %v555, %v1533
        %v1545 = vmul.f32 %v556, %v1533
        %v1546 = vmul.f32 %v557, %v1533
        %v1547 = vmul.f32 %v559, %v1533
        %v1548 = vmul.f32 %v560, %v1533
        %v1549 = vmul.f32 %v561, %v1533
        %v1550 = vmul.f32 %v563, %v1533
        %v1551 = vmul.f32 %v564, %v1533
        %v1552 = vmul.f32 %v565, %v1533
        %v1553 = vmul.f32 %v567, %v1533
        %v1554 = vmul.f32 %v568, %v1533
        %v1555 = vmul.f32 %v569, %v1533
        %v1556 = vmul.f32 %v571, %v1533
        %v1557 = vmul.f32 %v572, %v1533
        %v1558 = vmul.f32 %v573, %v1533
        %v1559 = vmul.f32 %v575, %v1533
        %v1560 = vmul.f32 %v576, %v1533
        %v1561 = vmul.f32 %v577, %v1533
        %v1562 = vmul.f32 %v579, %v1533
        %v1563 = vmul.f32 %v580, %v1533
        %v1564 = vmul.f32 %v581, %v1533
        %v1565 = vmul.f32 %v583, %v1533
        %v1566 = vmul.f32 %v584, %v1533
        %v1567 = vmul.f32 %v585, %v1533
        %v1568 = vmul.f32 %v587, %v1533
        %v1569 = vmul.f32 %v588, %v1533
        %v1570 = vmul.f32 %v589, %v1533
        %v1571 = vmul.f32 %v591, %v1533
        %v1572 = vmul.f32 %v592, %v1533
        %v1573 = vmul.f32 %v593, %v1533
        %v1574 = vmul.f32 %v595, %v1533
        %v1575 = vmul.f32 %v596, %v1533
        %v1576 = vmul.f32 %v597, %v1533
        %v1577 = vmul.f32 %v599, %v1533
        %v1578 = vmul.f32 %v600, %v1533
        %v1579 = vmul.f32 %v601, %v1533
        %v1580 = vmul.f32 %v1204, %v1533
        %v1581 = vmul.f32 %v1205, %v1533
        %v1582 = vmul.f32 %v1206, %v1533
        %v1631 = vrot.slane %v1535, 2
        %v1632 = vrot.slane %v1536, 2
        %v1633 = vsel %vm1026, %v1631, %v1632
        %v1634 = vrot.slane %v1537, 2
        %v1635 = vsel %vm1026, %v1632, %v1634
        %v1636 = vrot.slane %v1538, 2
        %v1637 = vrot.slane %v1539, 2
        %v1638 = vsel %vm1026, %v1636, %v1637
        %v1639 = vrot.slane %v1540, 2
        %v1640 = vsel %vm1026, %v1637, %v1639
        %v1641 = vrot.slane %v1541, 2
        %v1642 = vrot.slane %v1542, 2
        %v1643 = vsel %vm1026, %v1641, %v1642
        %v1644 = vrot.slane %v1543, 2
        %v1645 = vsel %vm1026, %v1642, %v1644
        %v1646 = vrot.slane %v1544, 2
        %v1647 = vrot.slane %v1545, 2
        %v1648 = vsel %vm1026, %v1646, %v1647
        %v1649 = vrot.slane %v1546, 2
        %v1650 = vsel %vm1026, %v1647, %v1649
        %v1651 = vrot.slane %v1547, 2
        %v1652 = vrot.slane %v1548, 2
        %v1653 = vsel %vm1026, %v1651, %v1652
        %v1654 = vrot.slane %v1549, 2
        %v1655 = vsel %vm1026, %v1652, %v1654
        %v1656 = vrot.slane %v1550, 2
        %v1657 = vrot.slane %v1551, 2
        %v1658 = vsel %vm1026, %v1656, %v1657
        %v1659 = vrot.slane %v1552, 2
        %v1660 = vsel %vm1026, %v1657, %v1659
        %v1661 = vrot.slane %v1553, 2
        %v1662 = vrot.slane %v1554, 2
        %v1663 = vsel %vm1026, %v1661, %v1662
        %v1664 = vrot.slane %v1555, 2
        %v1665 = vsel %vm1026, %v1662, %v1664
        %v1666 = vrot.slane %v1556, 2
        %v1667 = vrot.slane %v1557, 2
        %v1668 = vsel %vm1026, %v1666, %v1667
        %v1669 = vrot.slane %v1558, 2
        %v1670 = vsel %vm1026, %v1667, %v1669
        %v1671 = vrot.slane %v1559, 2
        %v1672 = vrot.slane %v1560, 2
        %v1673 = vsel %vm1026, %v1671, %v1672
        %v1674 = vrot.slane %v1561, 2
        %v1675 = vsel %vm1026, %v1672, %v1674
        %v1676 = vrot.slane %v1562, 2
        %v1677 = vrot.slane %v1563, 2
        %v1678 = vsel %vm1026, %v1676, %v1677
        %v1679 = vrot.slane %v1564, 2
        %v1680 = vsel %vm1026, %v1677, %v1679
        %v1681 = vrot.slane %v1565, 2
        %v1682 = vrot.slane %v1566, 2
        %v1683 = vsel %vm1026, %v1681, %v1682
        %v1684 = vrot.slane %v1567, 2
        %v1685 = vsel %vm1026, %v1682, %v1684
        %v1686 = vrot.slane %v1568, 2
        %v1687 = vrot.slane %v1569, 2
        %v1688 = vsel %vm1026, %v1686, %v1687
        %v1689 = vrot.slane %v1570, 2
        %v1690 = vsel %vm1026, %v1687, %v1689
        %v1691 = vrot.slane %v1571, 2
        %v1692 = vrot.slane %v1572, 2
        %v1693 = vsel %vm1026, %v1691, %v1692
        %v1694 = vrot.slane %v1573, 2
        %v1695 = vsel %vm1026, %v1692, %v1694
        %v1696 = vrot.slane %v1574, 2
        %v1697 = vrot.slane %v1575, 2
        %v1698 = vsel %vm1026, %v1696, %v1697
        %v1699 = vrot.slane %v1576, 2
        %v1700 = vsel %vm1026, %v1697, %v1699
        %v1701 = vrot.slane %v1577, 2
        %v1702 = vrot.slane %v1578, 2
        %v1703 = vsel %vm1026, %v1701, %v1702
        %v1704 = vrot.slane %v1579, 2
        %v1705 = vsel %vm1026, %v1702, %v1704
        %v1706 = vrot.slane %v1580, 2
        %v1707 = vrot.slane %v1581, 2
        %v1708 = vsel %vm1026, %v1706, %v1707
        %v1709 = vrot.slane %v1582, 2
        %v1710 = vsel %vm1026, %v1707, %v1709
        %v1759 = vadd.f32 %v1479, %v1631
        %v1760 = vadd.f32 %v1480, %v1633
        %v1761 = vadd.f32 %v1481, %v1635
        %v1762 = vadd.f32 %v1482, %v1636
        %v1763 = vadd.f32 %v1483, %v1638
        %v1764 = vadd.f32 %v1484, %v1640
        %v1765 = vadd.f32 %v1485, %v1641
        %v1766 = vadd.f32 %v1486, %v1643
        %v1767 = vadd.f32 %v1487, %v1645
        %v1768 = vadd.f32 %v1488, %v1646
        %v1769 = vadd.f32 %v1489, %v1648
        %v1770 = vadd.f32 %v1490, %v1650
        %v1771 = vadd.f32 %v1491, %v1651
        %v1772 = vadd.f32 %v1492, %v1653
        %v1773 = vadd.f32 %v1493, %v1655
        %v1774 = vadd.f32 %v1494, %v1656
        %v1775 = vadd.f32 %v1495, %v1658
        %v1776 = vadd.f32 %v1496, %v1660
        %v1777 = vadd.f32 %v1497, %v1661
        %v1778 = vadd.f32 %v1498, %v1663
        %v1779 = vadd.f32 %v1499, %v1665
        %v1780 = vadd.f32 %v1500, %v1666
        %v1781 = vadd.f32 %v1501, %v1668
        %v1782 = vadd.f32 %v1502, %v1670
        %v1783 = vadd.f32 %v1503, %v1671
        %v1784 = vadd.f32 %v1504, %v1673
        %v1785 = vadd.f32 %v1505, %v1675
        %v1786 = vadd.f32 %v1506, %v1676
        %v1787 = vadd.f32 %v1507, %v1678
        %v1788 = vadd.f32 %v1508, %v1680
        %v1789 = vadd.f32 %v1509, %v1681
        %v1790 = vadd.f32 %v1510, %v1683
        %v1791 = vadd.f32 %v1511, %v1685
        %v1792 = vadd.f32 %v1512, %v1686
        %v1793 = vadd.f32 %v1513, %v1688
        %v1794 = vadd.f32 %v1514, %v1690
        %v1795 = vadd.f32 %v1515, %v1691
        %v1796 = vadd.f32 %v1516, %v1693
        %v1797 = vadd.f32 %v1517, %v1695
        %v1798 = vadd.f32 %v1518, %v1696
        %v1799 = vadd.f32 %v1519, %v1698
        %v1800 = vadd.f32 %v1520, %v1700
        %v1801 = vadd.f32 %v1521, %v1701
        %v1802 = vadd.f32 %v1522, %v1703
        %v1803 = vadd.f32 %v1523, %v1705
        %v1804 = vadd.f32 %v1524, %v1706
        %v1805 = vadd.f32 %v1525, %v1708
        %v1806 = vadd.f32 %v1526, %v1710
        %v1807 = vunpack.c.h.bf16 %v535
        %v1808 = vunpack.c.l.bf16 %v536
        %v1809 = vunpack.c.h.bf16 %v536
        %v1810 = vunpack.c.l.bf16 %v537
        %s1811 = scalar_lea.vmem [#allocation6], 6
        %v1812 = vld [vmem:[%s1811] sm:$0x1]
        %v1814 = vlaneseq
        %v1815 = vshrl.u32 %v1814, 7
        %v1816 = vsub.s32 0, %v1815
        %v1817 = vrot.slane %v1812, %v1816
        %v1819 = vmul.f32 %v546, %v1817
        %v1820 = vmul.f32 %v547, %v1817
        %v1821 = vmul.f32 %v548, %v1817
        %v1822 = vmul.f32 %v550, %v1817
        %v1823 = vmul.f32 %v551, %v1817
        %v1824 = vmul.f32 %v552, %v1817
        %v1825 = vmul.f32 %v554, %v1817
        %v1826 = vmul.f32 %v555, %v1817
        %v1827 = vmul.f32 %v556, %v1817
        %v1828 = vmul.f32 %v558, %v1817
        %v1829 = vmul.f32 %v559, %v1817
        %v1830 = vmul.f32 %v560, %v1817
        %v1831 = vmul.f32 %v562, %v1817
        %v1832 = vmul.f32 %v563, %v1817
        %v1833 = vmul.f32 %v564, %v1817
        %v1834 = vmul.f32 %v566, %v1817
        %v1835 = vmul.f32 %v567, %v1817
        %v1836 = vmul.f32 %v568, %v1817
        %v1837 = vmul.f32 %v570, %v1817
        %v1838 = vmul.f32 %v571, %v1817
        %v1839 = vmul.f32 %v572, %v1817
        %v1840 = vmul.f32 %v574, %v1817
        %v1841 = vmul.f32 %v575, %v1817
        %v1842 = vmul.f32 %v576, %v1817
        %v1843 = vmul.f32 %v578, %v1817
        %v1844 = vmul.f32 %v579, %v1817
        %v1845 = vmul.f32 %v580, %v1817
        %v1846 = vmul.f32 %v582, %v1817
        %v1847 = vmul.f32 %v583, %v1817
        %v1848 = vmul.f32 %v584, %v1817
        %v1849 = vmul.f32 %v586, %v1817
        %v1850 = vmul.f32 %v587, %v1817
        %v1851 = vmul.f32 %v588, %v1817
        %v1852 = vmul.f32 %v590, %v1817
        %v1853 = vmul.f32 %v591, %v1817
        %v1854 = vmul.f32 %v592, %v1817
        %v1855 = vmul.f32 %v594, %v1817
        %v1856 = vmul.f32 %v595, %v1817
        %v1857 = vmul.f32 %v596, %v1817
        %v1858 = vmul.f32 %v598, %v1817
        %v1859 = vmul.f32 %v599, %v1817
        %v1860 = vmul.f32 %v600, %v1817
        %v1861 = vmul.f32 %v1203, %v1817
        %v1862 = vmul.f32 %v1204, %v1817
        %v1863 = vmul.f32 %v1205, %v1817
        %v1864 = vmul.f32 %v1807, %v1817
        %v1865 = vmul.f32 %v1808, %v1817
        %v1866 = vmul.f32 %v1809, %v1817
        %v1867 = vadd.f32 %v1759, %v1819
        %v1868 = vadd.f32 %v1760, %v1820
        %v1869 = vadd.f32 %v1761, %v1821
        %v1870 = vadd.f32 %v1762, %v1822
        %v1871 = vadd.f32 %v1763, %v1823
        %v1872 = vadd.f32 %v1764, %v1824
        %v1873 = vadd.f32 %v1765, %v1825
        %v1874 = vadd.f32 %v1766, %v1826
        %v1875 = vadd.f32 %v1767, %v1827
        %v1876 = vadd.f32 %v1768, %v1828
        %v1877 = vadd.f32 %v1769, %v1829
        %v1878 = vadd.f32 %v1770, %v1830
        %v1879 = vadd.f32 %v1771, %v1831
        %v1880 = vadd.f32 %v1772, %v1832
        %v1881 = vadd.f32 %v1773, %v1833
        %v1882 = vadd.f32 %v1774, %v1834
        %v1883 = vadd.f32 %v1775, %v1835
        %v1884 = vadd.f32 %v1776, %v1836
        %v1885 = vadd.f32 %v1777, %v1837
        %v1886 = vadd.f32 %v1778, %v1838
        %v1887 = vadd.f32 %v1779, %v1839
        %v1888 = vadd.f32 %v1780, %v1840
        %v1889 = vadd.f32 %v1781, %v1841
        %v1890 = vadd.f32 %v1782, %v1842
        %v1891 = vadd.f32 %v1783, %v1843
        %v1892 = vadd.f32 %v1784, %v1844
        %v1893 = vadd.f32 %v1785, %v1845
        %v1894 = vadd.f32 %v1786, %v1846
        %v1895 = vadd.f32 %v1787, %v1847
        %v1896 = vadd.f32 %v1788, %v1848
        %v1897 = vadd.f32 %v1789, %v1849
        %v1898 = vadd.f32 %v1790, %v1850
        %v1899 = vadd.f32 %v1791, %v1851
        %v1900 = vadd.f32 %v1792, %v1852
        %v1901 = vadd.f32 %v1793, %v1853
        %v1902 = vadd.f32 %v1794, %v1854
        %v1903 = vadd.f32 %v1795, %v1855
        %v1904 = vadd.f32 %v1796, %v1856
        %v1905 = vadd.f32 %v1797, %v1857
        %v1906 = vadd.f32 %v1798, %v1858
        %v1907 = vadd.f32 %v1799, %v1859
        %v1908 = vadd.f32 %v1800, %v1860
        %v1909 = vadd.f32 %v1801, %v1861
        %v1910 = vadd.f32 %v1802, %v1862
        %v1911 = vadd.f32 %v1803, %v1863
        %v1912 = vadd.f32 %v1804, %v1864
        %v1913 = vadd.f32 %v1805, %v1865
        %v1914 = vadd.f32 %v1806, %v1866
        %s1915 = scalar_lea.vmem [#allocation6], 7
        %v1916 = vld [vmem:[%s1915] sm:$0x1]
        %v1918 = vlaneseq
        %v1919 = vshrl.u32 %v1918, 7
        %v1920 = vsub.s32 0, %v1919
        %v1921 = vrot.slane %v1916, %v1920
        %v1923 = vmul.f32 %v547, %v1921
        %v1924 = vmul.f32 %v548, %v1921
        %v1925 = vmul.f32 %v551, %v1921
        %v1926 = vmul.f32 %v552, %v1921
        %v1927 = vmul.f32 %v555, %v1921
        %v1928 = vmul.f32 %v556, %v1921
        %v1929 = vmul.f32 %v559, %v1921
        %v1930 = vmul.f32 %v560, %v1921
        %v1931 = vmul.f32 %v563, %v1921
        %v1932 = vmul.f32 %v564, %v1921
        %v1933 = vmul.f32 %v567, %v1921
        %v1934 = vmul.f32 %v568, %v1921
        %v1935 = vmul.f32 %v571, %v1921
        %v1936 = vmul.f32 %v572, %v1921
        %v1937 = vmul.f32 %v575, %v1921
        %v1938 = vmul.f32 %v576, %v1921
        %v1939 = vmul.f32 %v579, %v1921
        %v1940 = vmul.f32 %v580, %v1921
        %v1941 = vmul.f32 %v583, %v1921
        %v1942 = vmul.f32 %v584, %v1921
        %v1943 = vmul.f32 %v587, %v1921
        %v1944 = vmul.f32 %v588, %v1921
        %v1945 = vmul.f32 %v591, %v1921
        %v1946 = vmul.f32 %v592, %v1921
        %v1947 = vmul.f32 %v595, %v1921
        %v1948 = vmul.f32 %v596, %v1921
        %v1949 = vmul.f32 %v599, %v1921
        %v1950 = vmul.f32 %v600, %v1921
        %v1951 = vmul.f32 %v1204, %v1921
        %v1952 = vmul.f32 %v1205, %v1921
        %v1953 = vmul.f32 %v1808, %v1921
        %v1954 = vmul.f32 %v1809, %v1921
        %v1987 = vrot.slane %v1923, 1
        %v1988 = vrot.slane %v1924, 1
        %v1989 = vsel %vm777, %v1987, %v1988
        %v1990 = vrot.slane %v1925, 1
        %v1991 = vrot.slane %v1926, 1
        %v1992 = vsel %vm777, %v1990, %v1991
        %v1993 = vrot.slane %v1927, 1
        %v1994 = vrot.slane %v1928, 1
        %v1995 = vsel %vm777, %v1993, %v1994
        %v1996 = vrot.slane %v1929, 1
        %v1997 = vrot.slane %v1930, 1
        %v1998 = vsel %vm777, %v1996, %v1997
        %v1999 = vrot.slane %v1931, 1
        %v2000 = vrot.slane %v1932, 1
        %v2001 = vsel %vm777, %v1999, %v2000
        %v2002 = vrot.slane %v1933, 1
        %v2003 = vrot.slane %v1934, 1
        %v2004 = vsel %vm777, %v2002, %v2003
        %v2005 = vrot.slane %v1935, 1
        %v2006 = vrot.slane %v1936, 1
        %v2007 = vsel %vm777, %v2005, %v2006
        %v2008 = vrot.slane %v1937, 1
        %v2009 = vrot.slane %v1938, 1
        %v2010 = vsel %vm777, %v2008, %v2009
        %v2011 = vrot.slane %v1939, 1
        %v2012 = vrot.slane %v1940, 1
        %v2013 = vsel %vm777, %v2011, %v2012
        %v2014 = vrot.slane %v1941, 1
        %v2015 = vrot.slane %v1942, 1
        %v2016 = vsel %vm777, %v2014, %v2015
        %v2017 = vrot.slane %v1943, 1
        %v2018 = vrot.slane %v1944, 1
        %v2019 = vsel %vm777, %v2017, %v2018
        %v2020 = vrot.slane %v1945, 1
        %v2021 = vrot.slane %v1946, 1
        %v2022 = vsel %vm777, %v2020, %v2021
        %v2023 = vrot.slane %v1947, 1
        %v2024 = vrot.slane %v1948, 1
        %v2025 = vsel %vm777, %v2023, %v2024
        %v2026 = vrot.slane %v1949, 1
        %v2027 = vrot.slane %v1950, 1
        %v2028 = vsel %vm777, %v2026, %v2027
        %v2029 = vrot.slane %v1951, 1
        %v2030 = vrot.slane %v1952, 1
        %v2031 = vsel %vm777, %v2029, %v2030
        %v2032 = vrot.slane %v1953, 1
        %v2033 = vrot.slane %v1954, 1
        %v2034 = vsel %vm777, %v2032, %v2033
        %v2083 = vadd.f32 %v1867, %v1987
        %v2084 = vadd.f32 %v1868, %v1989
        %v2085 = vadd.f32 %v1869, %v1988
        %v2086 = vadd.f32 %v1870, %v1990
        %v2087 = vadd.f32 %v1871, %v1992
        %v2088 = vadd.f32 %v1872, %v1991
        %v2089 = vadd.f32 %v1873, %v1993
        %v2090 = vadd.f32 %v1874, %v1995
        %v2091 = vadd.f32 %v1875, %v1994
        %v2092 = vadd.f32 %v1876, %v1996
        %v2093 = vadd.f32 %v1877, %v1998
        %v2094 = vadd.f32 %v1878, %v1997
        %v2095 = vadd.f32 %v1879, %v1999
        %v2096 = vadd.f32 %v1880, %v2001
        %v2097 = vadd.f32 %v1881, %v2000
        %v2098 = vadd.f32 %v1882, %v2002
        %v2099 = vadd.f32 %v1883, %v2004
        %v2100 = vadd.f32 %v1884, %v2003
        %v2101 = vadd.f32 %v1885, %v2005
        %v2102 = vadd.f32 %v1886, %v2007
        %v2103 = vadd.f32 %v1887, %v2006
        %v2104 = vadd.f32 %v1888, %v2008
        %v2105 = vadd.f32 %v1889, %v2010
        %v2106 = vadd.f32 %v1890, %v2009
        %v2107 = vadd.f32 %v1891, %v2011
        %v2108 = vadd.f32 %v1892, %v2013
        %v2109 = vadd.f32 %v1893, %v2012
        %v2110 = vadd.f32 %v1894, %v2014
        %v2111 = vadd.f32 %v1895, %v2016
        %v2112 = vadd.f32 %v1896, %v2015
        %v2113 = vadd.f32 %v1897, %v2017
        %v2114 = vadd.f32 %v1898, %v2019
        %v2115 = vadd.f32 %v1899, %v2018
        %v2116 = vadd.f32 %v1900, %v2020
        %v2117 = vadd.f32 %v1901, %v2022
        %v2118 = vadd.f32 %v1902, %v2021
        %v2119 = vadd.f32 %v1903, %v2023
        %v2120 = vadd.f32 %v1904, %v2025
        %v2121 = vadd.f32 %v1905, %v2024
        %v2122 = vadd.f32 %v1906, %v2026
        %v2123 = vadd.f32 %v1907, %v2028
        %v2124 = vadd.f32 %v1908, %v2027
        %v2125 = vadd.f32 %v1909, %v2029
        %v2126 = vadd.f32 %v1910, %v2031
        %v2127 = vadd.f32 %v1911, %v2030
        %v2128 = vadd.f32 %v1912, %v2032
        %v2129 = vadd.f32 %v1913, %v2034
        %v2130 = vadd.f32 %v1914, %v2033
        %s2131 = scalar_lea.vmem [#allocation6], 8
        %v2132 = vld [vmem:[%s2131] sm:$0x1]
        %v2134 = vlaneseq
        %v2135 = vshrl.u32 %v2134, 7
        %v2136 = vsub.s32 0, %v2135
        %v2137 = vrot.slane %v2132, %v2136
        %v2139 = vmul.f32 %v547, %v2137
        %v2140 = vmul.f32 %v548, %v2137
        %v2141 = vmul.f32 %v549, %v2137
        %v2142 = vmul.f32 %v551, %v2137
        %v2143 = vmul.f32 %v552, %v2137
        %v2144 = vmul.f32 %v553, %v2137
        %v2145 = vmul.f32 %v555, %v2137
        %v2146 = vmul.f32 %v556, %v2137
        %v2147 = vmul.f32 %v557, %v2137
        %v2148 = vmul.f32 %v559, %v2137
        %v2149 = vmul.f32 %v560, %v2137
        %v2150 = vmul.f32 %v561, %v2137
        %v2151 = vmul.f32 %v563, %v2137
        %v2152 = vmul.f32 %v564, %v2137
        %v2153 = vmul.f32 %v565, %v2137
        %v2154 = vmul.f32 %v567, %v2137
        %v2155 = vmul.f32 %v568, %v2137
        %v2156 = vmul.f32 %v569, %v2137
        %v2157 = vmul.f32 %v571, %v2137
        %v2158 = vmul.f32 %v572, %v2137
        %v2159 = vmul.f32 %v573, %v2137
        %v2160 = vmul.f32 %v575, %v2137
        %v2161 = vmul.f32 %v576, %v2137
        %v2162 = vmul.f32 %v577, %v2137
        %v2163 = vmul.f32 %v579, %v2137
        %v2164 = vmul.f32 %v580, %v2137
        %v2165 = vmul.f32 %v581, %v2137
        %v2166 = vmul.f32 %v583, %v2137
        %v2167 = vmul.f32 %v584, %v2137
        %v2168 = vmul.f32 %v585, %v2137
        %v2169 = vmul.f32 %v587, %v2137
        %v2170 = vmul.f32 %v588, %v2137
        %v2171 = vmul.f32 %v589, %v2137
        %v2172 = vmul.f32 %v591, %v2137
        %v2173 = vmul.f32 %v592, %v2137
        %v2174 = vmul.f32 %v593, %v2137
        %v2175 = vmul.f32 %v595, %v2137
        %v2176 = vmul.f32 %v596, %v2137
        %v2177 = vmul.f32 %v597, %v2137
        %v2178 = vmul.f32 %v599, %v2137
        %v2179 = vmul.f32 %v600, %v2137
        %v2180 = vmul.f32 %v601, %v2137
        %v2181 = vmul.f32 %v1204, %v2137
        %v2182 = vmul.f32 %v1205, %v2137
        %v2183 = vmul.f32 %v1206, %v2137
        %v2184 = vmul.f32 %v1808, %v2137
        %v2185 = vmul.f32 %v1809, %v2137
        %v2186 = vmul.f32 %v1810, %v2137
        %v2235 = vrot.slane %v2139, 2
        %v2236 = vrot.slane %v2140, 2
        %v2237 = vsel %vm1026, %v2235, %v2236
        %v2238 = vrot.slane %v2141, 2
        %v2239 = vsel %vm1026, %v2236, %v2238
        %v2240 = vrot.slane %v2142, 2
        %v2241 = vrot.slane %v2143, 2
        %v2242 = vsel %vm1026, %v2240, %v2241
        %v2243 = vrot.slane %v2144, 2
        %v2244 = vsel %vm1026, %v2241, %v2243
        %v2245 = vrot.slane %v2145, 2
        %v2246 = vrot.slane %v2146, 2
        %v2247 = vsel %vm1026, %v2245, %v2246
        %v2248 = vrot.slane %v2147, 2
        %v2249 = vsel %vm1026, %v2246, %v2248
        %v2250 = vrot.slane %v2148, 2
        %v2251 = vrot.slane %v2149, 2
        %v2252 = vsel %vm1026, %v2250, %v2251
        %v2253 = vrot.slane %v2150, 2
        %v2254 = vsel %vm1026, %v2251, %v2253
        %v2255 = vrot.slane %v2151, 2
        %v2256 = vrot.slane %v2152, 2
        %v2257 = vsel %vm1026, %v2255, %v2256
        %v2258 = vrot.slane %v2153, 2
        %v2259 = vsel %vm1026, %v2256, %v2258
        %v2260 = vrot.slane %v2154, 2
        %v2261 = vrot.slane %v2155, 2
        %v2262 = vsel %vm1026, %v2260, %v2261
        %v2263 = vrot.slane %v2156, 2
        %v2264 = vsel %vm1026, %v2261, %v2263
        %v2265 = vrot.slane %v2157, 2
        %v2266 = vrot.slane %v2158, 2
        %v2267 = vsel %vm1026, %v2265, %v2266
        %v2268 = vrot.slane %v2159, 2
        %v2269 = vsel %vm1026, %v2266, %v2268
        %v2270 = vrot.slane %v2160, 2
        %v2271 = vrot.slane %v2161, 2
        %v2272 = vsel %vm1026, %v2270, %v2271
        %v2273 = vrot.slane %v2162, 2
        %v2274 = vsel %vm1026, %v2271, %v2273
        %v2275 = vrot.slane %v2163, 2
        %v2276 = vrot.slane %v2164, 2
        %v2277 = vsel %vm1026, %v2275, %v2276
        %v2278 = vrot.slane %v2165, 2
        %v2279 = vsel %vm1026, %v2276, %v2278
        %v2280 = vrot.slane %v2166, 2
        %v2281 = vrot.slane %v2167, 2
        %v2282 = vsel %vm1026, %v2280, %v2281
        %v2283 = vrot.slane %v2168, 2
        %v2284 = vsel %vm1026, %v2281, %v2283
        %v2285 = vrot.slane %v2169, 2
        %v2286 = vrot.slane %v2170, 2
        %v2287 = vsel %vm1026, %v2285, %v2286
        %v2288 = vrot.slane %v2171, 2
        %v2289 = vsel %vm1026, %v2286, %v2288
        %v2290 = vrot.slane %v2172, 2
        %v2291 = vrot.slane %v2173, 2
        %v2292 = vsel %vm1026, %v2290, %v2291
        %v2293 = vrot.slane %v2174, 2
        %v2294 = vsel %vm1026, %v2291, %v2293
        %v2295 = vrot.slane %v2175, 2
        %v2296 = vrot.slane %v2176, 2
        %v2297 = vsel %vm1026, %v2295, %v2296
        %v2298 = vrot.slane %v2177, 2
        %v2299 = vsel %vm1026, %v2296, %v2298
        %v2300 = vrot.slane %v2178, 2
        %v2301 = vrot.slane %v2179, 2
        %v2302 = vsel %vm1026, %v2300, %v2301
        %v2303 = vrot.slane %v2180, 2
        %v2304 = vsel %vm1026, %v2301, %v2303
        %v2305 = vrot.slane %v2181, 2
        %v2306 = vrot.slane %v2182, 2
        %v2307 = vsel %vm1026, %v2305, %v2306
        %v2308 = vrot.slane %v2183, 2
        %v2309 = vsel %vm1026, %v2306, %v2308
        %v2310 = vrot.slane %v2184, 2
        %v2311 = vrot.slane %v2185, 2
        %v2312 = vsel %vm1026, %v2310, %v2311
        %v2313 = vrot.slane %v2186, 2
        %v2314 = vsel %vm1026, %v2311, %v2313
        %v2363 = vadd.f32 %v2083, %v2235
        %v2364 = vadd.f32 %v2084, %v2237
        %v2365 = vadd.f32 %v2085, %v2239
        %v2366 = vadd.f32 %v2086, %v2240
        %v2367 = vadd.f32 %v2087, %v2242
        %v2368 = vadd.f32 %v2088, %v2244
        %v2369 = vadd.f32 %v2089, %v2245
        %v2370 = vadd.f32 %v2090, %v2247
        %v2371 = vadd.f32 %v2091, %v2249
        %v2372 = vadd.f32 %v2092, %v2250
        %v2373 = vadd.f32 %v2093, %v2252
        %v2374 = vadd.f32 %v2094, %v2254
        %v2375 = vadd.f32 %v2095, %v2255
        %v2376 = vadd.f32 %v2096, %v2257
        %v2377 = vadd.f32 %v2097, %v2259
        %v2378 = vadd.f32 %v2098, %v2260
        %v2379 = vadd.f32 %v2099, %v2262
        %v2380 = vadd.f32 %v2100, %v2264
        %v2381 = vadd.f32 %v2101, %v2265
        %v2382 = vadd.f32 %v2102, %v2267
        %v2383 = vadd.f32 %v2103, %v2269
        %v2384 = vadd.f32 %v2104, %v2270
        %v2385 = vadd.f32 %v2105, %v2272
        %v2386 = vadd.f32 %v2106, %v2274
        %v2387 = vadd.f32 %v2107, %v2275
        %v2388 = vadd.f32 %v2108, %v2277
        %v2389 = vadd.f32 %v2109, %v2279
        %v2390 = vadd.f32 %v2110, %v2280
        %v2391 = vadd.f32 %v2111, %v2282
        %v2392 = vadd.f32 %v2112, %v2284
        %v2393 = vadd.f32 %v2113, %v2285
        %v2394 = vadd.f32 %v2114, %v2287
        %v2395 = vadd.f32 %v2115, %v2289
        %v2396 = vadd.f32 %v2116, %v2290
        %v2397 = vadd.f32 %v2117, %v2292
        %v2398 = vadd.f32 %v2118, %v2294
        %v2399 = vadd.f32 %v2119, %v2295
        %v2400 = vadd.f32 %v2120, %v2297
        %v2401 = vadd.f32 %v2121, %v2299
        %v2402 = vadd.f32 %v2122, %v2300
        %v2403 = vadd.f32 %v2123, %v2302
        %v2404 = vadd.f32 %v2124, %v2304
        %v2405 = vadd.f32 %v2125, %v2305
        %v2406 = vadd.f32 %v2126, %v2307
        %v2407 = vadd.f32 %v2127, %v2309
        %v2408 = vadd.f32 %v2128, %v2310
        %v2409 = vadd.f32 %v2129, %v2312
        %v2410 = vadd.f32 %v2130, %v2314
        %v2411 = vld [vmem:[%s279] sm:$0x1]
        %v2413 = vlaneseq
        %v2414 = vshrl.u32 %v2413, 7
        %v2415 = vsub.s32 0, %v2414
        %v2416 = vrot.slane %v2411, %v2415
        %v2418 = vmul.f32 %v2363, %v2416
        %v2419 = vmul.f32 %v2364, %v2416
        %v2420 = vmul.f32 %v2365, %v2416
        %v2421 = vmul.f32 %v2366, %v2416
        %v2422 = vmul.f32 %v2367, %v2416
        %v2423 = vmul.f32 %v2368, %v2416
        %v2424 = vmul.f32 %v2369, %v2416
        %v2425 = vmul.f32 %v2370, %v2416
        %v2426 = vmul.f32 %v2371, %v2416
        %v2427 = vmul.f32 %v2372, %v2416
        %v2428 = vmul.f32 %v2373, %v2416
        %v2429 = vmul.f32 %v2374, %v2416
        %v2430 = vmul.f32 %v2375, %v2416
        %v2431 = vmul.f32 %v2376, %v2416
        %v2432 = vmul.f32 %v2377, %v2416
        %v2433 = vmul.f32 %v2378, %v2416
        %v2434 = vmul.f32 %v2379, %v2416
        %v2435 = vmul.f32 %v2380, %v2416
        %v2436 = vmul.f32 %v2381, %v2416
        %v2437 = vmul.f32 %v2382, %v2416
        %v2438 = vmul.f32 %v2383, %v2416
        %v2439 = vmul.f32 %v2384, %v2416
        %v2440 = vmul.f32 %v2385, %v2416
        %v2441 = vmul.f32 %v2386, %v2416
        %v2442 = vmul.f32 %v2387, %v2416
        %v2443 = vmul.f32 %v2388, %v2416
        %v2444 = vmul.f32 %v2389, %v2416
        %v2445 = vmul.f32 %v2390, %v2416
        %v2446 = vmul.f32 %v2391, %v2416
        %v2447 = vmul.f32 %v2392, %v2416
        %v2448 = vmul.f32 %v2393, %v2416
        %v2449 = vmul.f32 %v2394, %v2416
        %v2450 = vmul.f32 %v2395, %v2416
        %v2451 = vmul.f32 %v2396, %v2416
        %v2452 = vmul.f32 %v2397, %v2416
        %v2453 = vmul.f32 %v2398, %v2416
        %v2454 = vmul.f32 %v2399, %v2416
        %v2455 = vmul.f32 %v2400, %v2416
        %v2456 = vmul.f32 %v2401, %v2416
        %v2457 = vmul.f32 %v2402, %v2416
        %v2458 = vmul.f32 %v2403, %v2416
        %v2459 = vmul.f32 %v2404, %v2416
        %v2460 = vmul.f32 %v2405, %v2416
        %v2461 = vmul.f32 %v2406, %v2416
        %v2462 = vmul.f32 %v2407, %v2416
        %v2463 = vmul.f32 %v2408, %v2416
        %v2464 = vmul.f32 %v2409, %v2416
        %v2465 = vmul.f32 %v2410, %v2416
        %v2466 = vld [vmem:[%s282] sm:$0x1]
        %v2468 = vlaneseq
        %v2469 = vshrl.u32 %v2468, 7
        %v2470 = vsub.s32 0, %v2469
        %v2471 = vrot.slane %v2466, %v2470
        %v2473 = vadd.f32 %v2418, %v2471
        %v2474 = vadd.f32 %v2419, %v2471
        %v2475 = vadd.f32 %v2420, %v2471
        %v2476 = vadd.f32 %v2421, %v2471
        %v2477 = vadd.f32 %v2422, %v2471
        %v2478 = vadd.f32 %v2423, %v2471
        %v2479 = vadd.f32 %v2424, %v2471
        %v2480 = vadd.f32 %v2425, %v2471
        %v2481 = vadd.f32 %v2426, %v2471
        %v2482 = vadd.f32 %v2427, %v2471
        %v2483 = vadd.f32 %v2428, %v2471
        %v2484 = vadd.f32 %v2429, %v2471
        %v2485 = vadd.f32 %v2430, %v2471
        %v2486 = vadd.f32 %v2431, %v2471
        %v2487 = vadd.f32 %v2432, %v2471
        %v2488 = vadd.f32 %v2433, %v2471
        %v2489 = vadd.f32 %v2434, %v2471
        %v2490 = vadd.f32 %v2435, %v2471
        %v2491 = vadd.f32 %v2436, %v2471
        %v2492 = vadd.f32 %v2437, %v2471
        %v2493 = vadd.f32 %v2438, %v2471
        %v2494 = vadd.f32 %v2439, %v2471
        %v2495 = vadd.f32 %v2440, %v2471
        %v2496 = vadd.f32 %v2441, %v2471
        %v2497 = vadd.f32 %v2442, %v2471
        %v2498 = vadd.f32 %v2443, %v2471
        %v2499 = vadd.f32 %v2444, %v2471
        %v2500 = vadd.f32 %v2445, %v2471
        %v2501 = vadd.f32 %v2446, %v2471
        %v2502 = vadd.f32 %v2447, %v2471
        %v2503 = vadd.f32 %v2448, %v2471
        %v2504 = vadd.f32 %v2449, %v2471
        %v2505 = vadd.f32 %v2450, %v2471
        %v2506 = vadd.f32 %v2451, %v2471
        %v2507 = vadd.f32 %v2452, %v2471
        %v2508 = vadd.f32 %v2453, %v2471
        %v2509 = vadd.f32 %v2454, %v2471
        %v2510 = vadd.f32 %v2455, %v2471
        %v2511 = vadd.f32 %v2456, %v2471
        %v2512 = vadd.f32 %v2457, %v2471
        %v2513 = vadd.f32 %v2458, %v2471
        %v2514 = vadd.f32 %v2459, %v2471
        %v2515 = vadd.f32 %v2460, %v2471
        %v2516 = vadd.f32 %v2461, %v2471
        %v2517 = vadd.f32 %v2462, %v2471
        %v2518 = vadd.f32 %v2463, %v2471
        %v2519 = vadd.f32 %v2464, %v2471
        %v2520 = vadd.f32 %v2465, %v2471
        %v2521 = vpack.c.bf16 %v2474, %v2473
        %v2522 = vpack.c.bf16 %v2475, %v2475
        %v2523 = vpack.c.bf16 %v2477, %v2476
        %v2524 = vpack.c.bf16 %v2478, %v2478
        %v2525 = vpack.c.bf16 %v2480, %v2479
        %v2526 = vpack.c.bf16 %v2481, %v2481
        %v2527 = vpack.c.bf16 %v2483, %v2482
        %v2528 = vpack.c.bf16 %v2484, %v2484
        %v2529 = vpack.c.bf16 %v2486, %v2485
        %v2530 = vpack.c.bf16 %v2487, %v2487
        %v2531 = vpack.c.bf16 %v2489, %v2488
        %v2532 = vpack.c.bf16 %v2490, %v2490
        %v2533 = vpack.c.bf16 %v2492, %v2491
        %v2534 = vpack.c.bf16 %v2493, %v2493
        %v2535 = vpack.c.bf16 %v2495, %v2494
        %v2536 = vpack.c.bf16 %v2496, %v2496
        %v2537 = vpack.c.bf16 %v2498, %v2497
        %v2538 = vpack.c.bf16 %v2499, %v2499
        %v2539 = vpack.c.bf16 %v2501, %v2500
        %v2540 = vpack.c.bf16 %v2502, %v2502
        %v2541 = vpack.c.bf16 %v2504, %v2503
        %v2542 = vpack.c.bf16 %v2505, %v2505
        %v2543 = vpack.c.bf16 %v2507, %v2506
        %v2544 = vpack.c.bf16 %v2508, %v2508
        %v2545 = vpack.c.bf16 %v2510, %v2509
        %v2546 = vpack.c.bf16 %v2511, %v2511
        %v2547 = vpack.c.bf16 %v2513, %v2512
        %v2548 = vpack.c.bf16 %v2514, %v2514
        %v2549 = vpack.c.bf16 %v2516, %v2515
        %v2550 = vpack.c.bf16 %v2517, %v2517
        %v2551 = vpack.c.bf16 %v2519, %v2518
        %v2552 = vpack.c.bf16 %v2520, %v2520
        %v2585 = vunpack.c.l.b16 %v2521
        %v2586 = vunpack.c.h.b16 %v2521
        %v2587 = vunpack.c.l.b16 %v2522
        %v2588 = vunpack.c.l.b16 %v2523
        %v2589 = vunpack.c.h.b16 %v2523
        %v2590 = vunpack.c.l.b16 %v2524
        %v2591 = vunpack.c.l.b16 %v2525
        %v2592 = vunpack.c.h.b16 %v2525
        %v2593 = vunpack.c.l.b16 %v2526
        %v2594 = vunpack.c.l.b16 %v2527
        %v2595 = vunpack.c.h.b16 %v2527
        %v2596 = vunpack.c.l.b16 %v2528
        %v2597 = vunpack.c.l.b16 %v2529
        %v2598 = vunpack.c.h.b16 %v2529
        %v2599 = vunpack.c.l.b16 %v2530
        %v2600 = vunpack.c.l.b16 %v2531
        %v2601 = vunpack.c.h.b16 %v2531
        %v2602 = vunpack.c.l.b16 %v2532
        %v2603 = vunpack.c.l.b16 %v2533
        %v2604 = vunpack.c.h.b16 %v2533
        %v2605 = vunpack.c.l.b16 %v2534
        %v2606 = vunpack.c.l.b16 %v2535
        %v2607 = vunpack.c.h.b16 %v2535
        %v2608 = vunpack.c.l.b16 %v2536
        %v2609 = vunpack.c.l.b16 %v2537
        %v2610 = vunpack.c.h.b16 %v2537
        %v2611 = vunpack.c.l.b16 %v2538
        %v2612 = vunpack.c.l.b16 %v2539
        %v2613 = vunpack.c.h.b16 %v2539
        %v2614 = vunpack.c.l.b16 %v2540
        %v2615 = vunpack.c.l.b16 %v2541
        %v2616 = vunpack.c.h.b16 %v2541
        %v2617 = vunpack.c.l.b16 %v2542
        %v2618 = vunpack.c.l.b16 %v2543
        %v2619 = vunpack.c.h.b16 %v2543
        %v2620 = vunpack.c.l.b16 %v2544
        %v2621 = vunpack.c.l.b16 %v2545
        %v2622 = vunpack.c.h.b16 %v2545
        %v2623 = vunpack.c.l.b16 %v2546
        %v2624 = vunpack.c.l.b16 %v2547
        %v2625 = vunpack.c.h.b16 %v2547
        %v2626 = vunpack.c.l.b16 %v2548
        %v2627 = vunpack.c.l.b16 %v2549
        %v2628 = vunpack.c.h.b16 %v2549
        %v2629 = vunpack.c.l.b16 %v2550
        %v2630 = vunpack.c.l.b16 %v2551
        %v2631 = vunpack.c.h.b16 %v2551
        %v2632 = vunpack.c.l.b16 %v2552
        %v2633 = vpack.c.b16 %v2585, %v2585
        %v2634 = vpack.c.b16 %v2586, %v2586
        %v2635 = vpack.c.b16 %v2587, %v2587
        %v2636 = vpack.c.b16 %v2588, %v2588
        %v2637 = vpack.c.b16 %v2589, %v2589
        %v2638 = vpack.c.b16 %v2590, %v2590
        %v2639 = vpack.c.b16 %v2591, %v2591
        %v2640 = vpack.c.b16 %v2592, %v2592
        %v2641 = vpack.c.b16 %v2593, %v2593
        %v2642 = vpack.c.b16 %v2594, %v2594
        %v2643 = vpack.c.b16 %v2595, %v2595
        %v2644 = vpack.c.b16 %v2596, %v2596
        %v2645 = vpack.c.b16 %v2597, %v2597
        %v2646 = vpack.c.b16 %v2598, %v2598
        %v2647 = vpack.c.b16 %v2599, %v2599
        %v2648 = vpack.c.b16 %v2600, %v2600
        %v2649 = vpack.c.b16 %v2601, %v2601
        %v2650 = vpack.c.b16 %v2602, %v2602
        %v2651 = vpack.c.b16 %v2603, %v2603
        %v2652 = vpack.c.b16 %v2604, %v2604
        %v2653 = vpack.c.b16 %v2605, %v2605
        %v2654 = vpack.c.b16 %v2606, %v2606
        %v2655 = vpack.c.b16 %v2607, %v2607
        %v2656 = vpack.c.b16 %v2608, %v2608
        %v2657 = vpack.c.b16 %v2609, %v2609
        %v2658 = vpack.c.b16 %v2610, %v2610
        %v2659 = vpack.c.b16 %v2611, %v2611
        %v2660 = vpack.c.b16 %v2612, %v2612
        %v2661 = vpack.c.b16 %v2613, %v2613
        %v2662 = vpack.c.b16 %v2614, %v2614
        %v2663 = vpack.c.b16 %v2615, %v2615
        %v2664 = vpack.c.b16 %v2616, %v2616
        %v2665 = vpack.c.b16 %v2617, %v2617
        %v2666 = vpack.c.b16 %v2618, %v2618
        %v2667 = vpack.c.b16 %v2619, %v2619
        %v2668 = vpack.c.b16 %v2620, %v2620
        %v2669 = vpack.c.b16 %v2621, %v2621
        %v2670 = vpack.c.b16 %v2622, %v2622
        %v2671 = vpack.c.b16 %v2623, %v2623
        %v2672 = vpack.c.b16 %v2624, %v2624
        %v2673 = vpack.c.b16 %v2625, %v2625
        %v2674 = vpack.c.b16 %v2626, %v2626
        %v2675 = vpack.c.b16 %v2627, %v2627
        %v2676 = vpack.c.b16 %v2628, %v2628
        %v2677 = vpack.c.b16 %v2629, %v2629
        %v2678 = vpack.c.b16 %v2630, %v2630
        %v2679 = vpack.c.b16 %v2631, %v2631
        %v2680 = vpack.c.b16 %v2632, %v2632
        %vm2681 = vsmask.f32 256
        %vm2682 = vsmask.f32 4368
        %vm2683 = vmor %vm2681, %vm2682
        %v2685 = vshrl.u32 %v2633, 16
        %v2687 = vrot.slane %v2685, 7
        %v2688 = vrot.slane %v2687, 4
        %v2690 = vshrl.u32 %v2634, 16
        %v2692 = vrot.slane %v2690, 7
        %v2693 = vshll.u32 %v2634, 16
        %v2695 = vor.u32 %v2692, %v2693
        %v2696 = vsel %vm2683, %v2688, %v2695
        %v2697 = vrot.slane %v2692, 4
        %v2699 = vshrl.u32 %v2635, 16
        %v2701 = vrot.slane %v2699, 7
        %v2702 = vshll.u32 %v2635, 16
        %v2704 = vor.u32 %v2701, %v2702
        %v2705 = vsel %vm2683, %v2697, %v2704
        %v2707 = vshrl.u32 %v2636, 16
        %v2709 = vrot.slane %v2707, 7
        %v2710 = vrot.slane %v2709, 4
        %v2712 = vshrl.u32 %v2637, 16
        %v2714 = vrot.slane %v2712, 7
        %v2715 = vshll.u32 %v2637, 16
        %v2717 = vor.u32 %v2714, %v2715
        %v2718 = vsel %vm2683, %v2710, %v2717
        %v2719 = vrot.slane %v2714, 4
        %v2721 = vshrl.u32 %v2638, 16
        %v2723 = vrot.slane %v2721, 7
        %v2724 = vshll.u32 %v2638, 16
        %v2726 = vor.u32 %v2723, %v2724
        %v2727 = vsel %vm2683, %v2719, %v2726
        %v2729 = vshrl.u32 %v2639, 16
        %v2731 = vrot.slane %v2729, 7
        %v2732 = vrot.slane %v2731, 4
        %v2734 = vshrl.u32 %v2640, 16
        %v2736 = vrot.slane %v2734, 7
        %v2737 = vshll.u32 %v2640, 16
        %v2739 = vor.u32 %v2736, %v2737
        %v2740 = vsel %vm2683, %v2732, %v2739
        %v2741 = vrot.slane %v2736, 4
        %v2743 = vshrl.u32 %v2641, 16
        %v2745 = vrot.slane %v2743, 7
        %v2746 = vshll.u32 %v2641, 16
        %v2748 = vor.u32 %v2745, %v2746
        %v2749 = vsel %vm2683, %v2741, %v2748
        %v2751 = vshrl.u32 %v2642, 16
        %v2753 = vrot.slane %v2751, 7
        %v2754 = vrot.slane %v2753, 4
        %v2756 = vshrl.u32 %v2643, 16
        %v2758 = vrot.slane %v2756, 7
        %v2759 = vshll.u32 %v2643, 16
        %v2761 = vor.u32 %v2758, %v2759
        %v2762 = vsel %vm2683, %v2754, %v2761
        %v2763 = vrot.slane %v2758, 4
        %v2765 = vshrl.u32 %v2644, 16
        %v2767 = vrot.slane %v2765, 7
        %v2768 = vshll.u32 %v2644, 16
        %v2770 = vor.u32 %v2767, %v2768
        %v2771 = vsel %vm2683, %v2763, %v2770
        %v2773 = vshrl.u32 %v2645, 16
        %v2775 = vrot.slane %v2773, 7
        %v2776 = vrot.slane %v2775, 4
        %v2778 = vshrl.u32 %v2646, 16
        %v2780 = vrot.slane %v2778, 7
        %v2781 = vshll.u32 %v2646, 16
        %v2783 = vor.u32 %v2780, %v2781
        %v2784 = vsel %vm2683, %v2776, %v2783
        %v2785 = vrot.slane %v2780, 4
        %v2787 = vshrl.u32 %v2647, 16
        %v2789 = vrot.slane %v2787, 7
        %v2790 = vshll.u32 %v2647, 16
        %v2792 = vor.u32 %v2789, %v2790
        %v2793 = vsel %vm2683, %v2785, %v2792
        %v2795 = vshrl.u32 %v2648, 16
        %v2797 = vrot.slane %v2795, 7
        %v2798 = vrot.slane %v2797, 4
        %v2800 = vshrl.u32 %v2649, 16
        %v2802 = vrot.slane %v2800, 7
        %v2803 = vshll.u32 %v2649, 16
        %v2805 = vor.u32 %v2802, %v2803
        %v2806 = vsel %vm2683, %v2798, %v2805
        %v2807 = vrot.slane %v2802, 4
        %v2809 = vshrl.u32 %v2650, 16
        %v2811 = vrot.slane %v2809, 7
        %v2812 = vshll.u32 %v2650, 16
        %v2814 = vor.u32 %v2811, %v2812
        %v2815 = vsel %vm2683, %v2807, %v2814
        %v2817 = vshrl.u32 %v2651, 16
        %v2819 = vrot.slane %v2817, 7
        %v2820 = vrot.slane %v2819, 4
        %v2822 = vshrl.u32 %v2652, 16
        %v2824 = vrot.slane %v2822, 7
        %v2825 = vshll.u32 %v2652, 16
        %v2827 = vor.u32 %v2824, %v2825
        %v2828 = vsel %vm2683, %v2820, %v2827
        %v2829 = vrot.slane %v2824, 4
        %v2831 = vshrl.u32 %v2653, 16
        %v2833 = vrot.slane %v2831, 7
        %v2834 = vshll.u32 %v2653, 16
        %v2836 = vor.u32 %v2833, %v2834
        %v2837 = vsel %vm2683, %v2829, %v2836
        %v2839 = vshrl.u32 %v2654, 16
        %v2841 = vrot.slane %v2839, 7
        %v2842 = vrot.slane %v2841, 4
        %v2844 = vshrl.u32 %v2655, 16
        %v2846 = vrot.slane %v2844, 7
        %v2847 = vshll.u32 %v2655, 16
        %v2849 = vor.u32 %v2846, %v2847
        %v2850 = vsel %vm2683, %v2842, %v2849
        %v2851 = vrot.slane %v2846, 4
        %v2853 = vshrl.u32 %v2656, 16
        %v2855 = vrot.slane %v2853, 7
        %v2856 = vshll.u32 %v2656, 16
        %v2858 = vor.u32 %v2855, %v2856
        %v2859 = vsel %vm2683, %v2851, %v2858
        %v2861 = vshrl.u32 %v2657, 16
        %v2863 = vrot.slane %v2861, 7
        %v2864 = vrot.slane %v2863, 4
        %v2866 = vshrl.u32 %v2658, 16
        %v2868 = vrot.slane %v2866, 7
        %v2869 = vshll.u32 %v2658, 16
        %v2871 = vor.u32 %v2868, %v2869
        %v2872 = vsel %vm2683, %v2864, %v2871
        %v2873 = vrot.slane %v2868, 4
        %v2875 = vshrl.u32 %v2659, 16
        %v2877 = vrot.slane %v2875, 7
        %v2878 = vshll.u32 %v2659, 16
        %v2880 = vor.u32 %v2877, %v2878
        %v2881 = vsel %vm2683, %v2873, %v2880
        %v2883 = vshrl.u32 %v2660, 16
        %v2885 = vrot.slane %v2883, 7
        %v2886 = vrot.slane %v2885, 4
        %v2888 = vshrl.u32 %v2661, 16
        %v2890 = vrot.slane %v2888, 7
        %v2891 = vshll.u32 %v2661, 16
        %v2893 = vor.u32 %v2890, %v2891
        %v2894 = vsel %vm2683, %v2886, %v2893
        %v2895 = vrot.slane %v2890, 4
        %v2897 = vshrl.u32 %v2662, 16
        %v2899 = vrot.slane %v2897, 7
        %v2900 = vshll.u32 %v2662, 16
        %v2902 = vor.u32 %v2899, %v2900
        %v2903 = vsel %vm2683, %v2895, %v2902
        %v2905 = vshrl.u32 %v2663, 16
        %v2907 = vrot.slane %v2905, 7
        %v2908 = vrot.slane %v2907, 4
        %v2910 = vshrl.u32 %v2664, 16
        %v2912 = vrot.slane %v2910, 7
        %v2913 = vshll.u32 %v2664, 16
        %v2915 = vor.u32 %v2912, %v2913
        %v2916 = vsel %vm2683, %v2908, %v2915
        %v2917 = vrot.slane %v2912, 4
        %v2919 = vshrl.u32 %v2665, 16
        %v2921 = vrot.slane %v2919, 7
        %v2922 = vshll.u32 %v2665, 16
        %v2924 = vor.u32 %v2921, %v2922
        %v2925 = vsel %vm2683, %v2917, %v2924
        %v2927 = vshrl.u32 %v2666, 16
        %v2929 = vrot.slane %v2927, 7
        %v2930 = vrot.slane %v2929, 4
        %v2932 = vshrl.u32 %v2667, 16
        %v2934 = vrot.slane %v2932, 7
        %v2935 = vshll.u32 %v2667, 16
        %v2937 = vor.u32 %v2934, %v2935
        %v2938 = vsel %vm2683, %v2930, %v2937
        %v2939 = vrot.slane %v2934, 4
        %v2941 = vshrl.u32 %v2668, 16
        %v2943 = vrot.slane %v2941, 7
        %v2944 = vshll.u32 %v2668, 16
        %v2946 = vor.u32 %v2943, %v2944
        %v2947 = vsel %vm2683, %v2939, %v2946
        %v2949 = vshrl.u32 %v2669, 16
        %v2951 = vrot.slane %v2949, 7
        %v2952 = vrot.slane %v2951, 4
        %v2954 = vshrl.u32 %v2670, 16
        %v2956 = vrot.slane %v2954, 7
        %v2957 = vshll.u32 %v2670, 16
        %v2959 = vor.u32 %v2956, %v2957
        %v2960 = vsel %vm2683, %v2952, %v2959
        %v2961 = vrot.slane %v2956, 4
        %v2963 = vshrl.u32 %v2671, 16
        %v2965 = vrot.slane %v2963, 7
        %v2966 = vshll.u32 %v2671, 16
        %v2968 = vor.u32 %v2965, %v2966
        %v2969 = vsel %vm2683, %v2961, %v2968
        %v2971 = vshrl.u32 %v2672, 16
        %v2973 = vrot.slane %v2971, 7
        %v2974 = vrot.slane %v2973, 4
        %v2976 = vshrl.u32 %v2673, 16
        %v2978 = vrot.slane %v2976, 7
        %v2979 = vshll.u32 %v2673, 16
        %v2981 = vor.u32 %v2978, %v2979
        %v2982 = vsel %vm2683, %v2974, %v2981
        %v2983 = vrot.slane %v2978, 4
        %v2985 = vshrl.u32 %v2674, 16
        %v2987 = vrot.slane %v2985, 7
        %v2988 = vshll.u32 %v2674, 16
        %v2990 = vor.u32 %v2987, %v2988
        %v2991 = vsel %vm2683, %v2983, %v2990
        %v2993 = vshrl.u32 %v2675, 16
        %v2995 = vrot.slane %v2993, 7
        %v2996 = vrot.slane %v2995, 4
        %v2998 = vshrl.u32 %v2676, 16
        %v3000 = vrot.slane %v2998, 7
        %v3001 = vshll.u32 %v2676, 16
        %v3003 = vor.u32 %v3000, %v3001
        %v3004 = vsel %vm2683, %v2996, %v3003
        %v3005 = vrot.slane %v3000, 4
        %v3007 = vshrl.u32 %v2677, 16
        %v3009 = vrot.slane %v3007, 7
        %v3010 = vshll.u32 %v2677, 16
        %v3012 = vor.u32 %v3009, %v3010
        %v3013 = vsel %vm2683, %v3005, %v3012
        %v3015 = vshrl.u32 %v2678, 16
        %v3017 = vrot.slane %v3015, 7
        %v3018 = vrot.slane %v3017, 4
        %v3020 = vshrl.u32 %v2679, 16
        %v3022 = vrot.slane %v3020, 7
        %v3023 = vshll.u32 %v2679, 16
        %v3025 = vor.u32 %v3022, %v3023
        %v3026 = vsel %vm2683, %v3018, %v3025
        %v3027 = vrot.slane %v3022, 4
        %v3029 = vshrl.u32 %v2680, 16
        %v3031 = vrot.slane %v3029, 7
        %v3032 = vshll.u32 %v2680, 16
        %v3034 = vor.u32 %v3031, %v3032
        %v3035 = vsel %vm2683, %v3027, %v3034
        %vm3068 = vcmask 125952
        %3069 = vst.msk [vmem:[%s276] sm:$0xf] %vm3068, %v2696
        %3070 = vst.msk [vmem:[%s276 + $0x4] sm:$0xf] %vm3068, %v2705
        %3071 = vst.msk [vmem:[%s276 + $0x8] sm:$0xf] %vm3068, %v2718
        %3072 = vst.msk [vmem:[%s276 + $0xc] sm:$0xf] %vm3068, %v2727
        %3073 = vst.msk [vmem:[%s276 + $0x10] sm:$0xf] %vm3068, %v2740
        %3074 = vst.msk [vmem:[%s276 + $0x14] sm:$0xf] %vm3068, %v2749
        %3075 = vst.msk [vmem:[%s276 + $0x18] sm:$0xf] %vm3068, %v2762
        %3076 = vst.msk [vmem:[%s276 + $0x1c] sm:$0xf] %vm3068, %v2771
        %3077 = vst.msk [vmem:[%s276 + $0x20] sm:$0xf] %vm3068, %v2784
        %3078 = vst.msk [vmem:[%s276 + $0x24] sm:$0xf] %vm3068, %v2793
        %3079 = vst.msk [vmem:[%s276 + $0x28] sm:$0xf] %vm3068, %v2806
        %3080 = vst.msk [vmem:[%s276 + $0x2c] sm:$0xf] %vm3068, %v2815
        %3081 = vst.msk [vmem:[%s276 + $0x30] sm:$0xf] %vm3068, %v2828
        %3082 = vst.msk [vmem:[%s276 + $0x34] sm:$0xf] %vm3068, %v2837
        %3083 = vst.msk [vmem:[%s276 + $0x38] sm:$0xf] %vm3068, %v2850
        %3084 = vst.msk [vmem:[%s276 + $0x3c] sm:$0xf] %vm3068, %v2859
        %3085 = vst.msk [vmem:[%s276 + $0x40] sm:$0xf] %vm3068, %v2872
        %3086 = vst.msk [vmem:[%s276 + $0x44] sm:$0xf] %vm3068, %v2881
        %3087 = vst.msk [vmem:[%s276 + $0x48] sm:$0xf] %vm3068, %v2894
        %3088 = vst.msk [vmem:[%s276 + $0x4c] sm:$0xf] %vm3068, %v2903
        %3089 = vst.msk [vmem:[%s276 + $0x50] sm:$0xf] %vm3068, %v2916
        %3090 = vst.msk [vmem:[%s276 + $0x54] sm:$0xf] %vm3068, %v2925
        %3091 = vst.msk [vmem:[%s276 + $0x58] sm:$0xf] %vm3068, %v2938
        %3092 = vst.msk [vmem:[%s276 + $0x5c] sm:$0xf] %vm3068, %v2947
        %3093 = vst.msk [vmem:[%s276 + $0x60] sm:$0xf] %vm3068, %v2960
        %3094 = vst.msk [vmem:[%s276 + $0x64] sm:$0xf] %vm3068, %v2969
        %3095 = vst.msk [vmem:[%s276 + $0x68] sm:$0xf] %vm3068, %v2982
        %3096 = vst.msk [vmem:[%s276 + $0x6c] sm:$0xf] %vm3068, %v2991
        %3097 = vst.msk [vmem:[%s276 + $0x70] sm:$0xf] %vm3068, %v3004
        %3098 = vst.msk [vmem:[%s276 + $0x74] sm:$0xf] %vm3068, %v3013
        %3099 = vst.msk [vmem:[%s276 + $0x78] sm:$0xf] %vm3068, %v3026
        %3100 = vst.msk [vmem:[%s276 + $0x7c] sm:$0xf] %vm3068, %v3035
        %s3101 = sand.u32 %s150, 1
        %s3102 = scalar_lea.sflag [#allocation5], %s3101
        %s3103 = sand.u32 %s150, 1
        %s3104 = smul.addr %s3103, 128
        %s3105 = scalar_lea.vmem [#allocation8], %s3104
        // Predicated region
        $region45: #{tpu_custom_call.1} parent=35 // pred_check
          %p3106 = pneg %p160
        $region46: #{tpu_custom_call.1} parent=35 // pred_check_branch
          %3108 = sbr.rel (%p3106) target = $region48
        $region47: #{tpu_custom_call.1} parent=35 // pred_region
          %s3110 = ssub.s32 2048, 2048
          %3111 = vsyncadd %s3102, %s3110
          %s3112 = smul.addr %s26, 32
          %s3113 = sadd.s32 %s27, %s3112
          %s3114 = smul.addr %s3113, 64
          %s3115 = scalar_lea.hbm %s4, %s3114
          %s3116 = sshll.u32 %s3105, 4
          %s3117 = int_to_ptr.vmem [resolvable:$true] %s3116
          %3122 = dma.vmem_to_hbm [thread:$0]  %s3117, 2048, %s3115, %s3102, 64, 64, 4
        $region48: #{tpu_custom_call.1} parent=35 // pred_fallthru
          _
      $region36: #{tpu_custom_call.1} parent=5 // pred_fallthru
        _
      %p3123 = scmp.le.s32.totalorder 2, %s17
      // Predicated region
      $region49: #{tpu_custom_call.1} parent=5 // pred_check
        %p3124 = pneg %p3123
      $region50: #{tpu_custom_call.1} parent=5 // pred_check_branch
        %3126 = sbr.rel (%p3124) target = $region52
      $region51: #{tpu_custom_call.1} parent=5 // pred_region
        %s3127 = ssub.s32 %s17, 2
        // Predicated region
        $region53: #{tpu_custom_call.1} parent=51 // pred_check
          %p3128 = pneg %p166
        $region54: #{tpu_custom_call.1} parent=51 // pred_check_branch
          %3130 = sbr.rel (%p3128) target = $region56
        $region55: #{tpu_custom_call.1} parent=51 // pred_region
          %s3131 = sand.u32 %s151, 1
          %s3132 = scalar_lea.sflag [#allocation5], %s3131
          %s3133 = sand.u32 %s151, 1
          %s3134 = smul.addr %s3133, 128
          %s3135 = scalar_lea.vmem [#allocation8], %s3134
          %3136 = dma.done %s3132, 2048
        $region56: #{tpu_custom_call.1} parent=51 // pred_fallthru
          _
      $region52: #{tpu_custom_call.1} parent=5 // pred_fallthru
        _
    $region6: #{tpu_custom_call.1} parent=1 // loop_footer
      %s21 = sadd.s32 1, %s17
    $region7: #{tpu_custom_call.1} parent=1 // loop_footer_branch
      %16 = sbr.rel target = $region3
    $region8: #{tpu_custom_call.1} parent=1 // loop_exit
      _
    %3137 = vsyncpa [#allocation4], 1
    %s3138 = scalar_lea.sflag [#allocation4], 1
    %3139 = vsyncpa %s3138, 1
    %3140 = vsyncpa [#allocation7], 1
    %3141 = vsyncpa [#allocation5], 1
    %s3142 = scalar_lea.sflag [#allocation5], 1
    %3143 = vsyncpa %s3142, 1

</llo_original>
